<compile_context>
chip_gen: v7x
topology: tpu7x:2x2x1
jax: 0.10.0
libtpu: 0.0.40
codegen_flags: <defaults>
</compile_context>

<pallas_src>
import functools

import jax
import jax.numpy as jnp
from jax.experimental import pallas as pl
from jax.experimental.pallas import tpu as pltpu


def _mil_fc_kernel(h_ref, w1_ref, b1_ref, w2_ref, b2_ref, logits_t_ref):
    """One instance tile: fc(Linear+ReLU) -> classifier -> transposed logit store.

    h:  (tn, D)     w1: (D, H)    b1: (1, H)
    w2: (H, CP)     b2: (1, CP)        CP = classes lane-padded to 128
    out logits_t: (CR, tn)             CR = classes sublane-padded to 8
    """
    # fc: Linear(D -> H) + ReLU.  (Dropout is identity in eval mode.)
    z = jnp.dot(h_ref[...], w1_ref[...], preferred_element_type=jnp.float32)
    z = jnp.maximum(z + b1_ref[...].astype(jnp.float32), 0.0)

    # classifier: Linear(H -> CP), lane-dense matmul (padded columns are zero).
    # Feed activations to the MXU in the weights' dtype (bf16 weights -> bf16).
    logits = jnp.dot(z.astype(w2_ref.dtype), w2_ref[...],
                     preferred_element_type=jnp.float32)
    logits = logits + b2_ref[...].astype(jnp.float32)

    # Lane-dense writeback: tile-aligned transpose (tn, CP) -> (CP, tn) on the
    # idle XLU slot; store only the first CR sublanes (the real classes).
    cr = logits_t_ref.shape[0]
    logits_t_ref[...] = jnp.transpose(logits)[:cr, :].astype(logits_t_ref.dtype)


def _vmem_footprint_bytes(tn, D, H, CP, CR, h_item, w_item):
    """Conservative per-core VMEM footprint of one pipelined grid step."""
    h_tiles = 2 * tn * D * h_item                         # double-buffered h tiles
    weights = 2 * ((D * H + H) + (H * CP + CP)) * w_item  # worst case: 2 buffers
    out_tiles = 2 * CR * tn * 4                           # double-buffered logits_t
    interm = tn * H * 4 + 2 * tn * CP * 4                 # z + logits + transpose
    return h_tiles + weights + out_tiles + interm


def _vmem_budget_bytes():
    """~70% of per-core VMEM (v5e/v6e: 128 MiB; v7x: 64 MiB per TensorCore)."""
    try:
        cap = int(pltpu.get_tpu_info().vmem_capacity_bytes)
    except Exception:
        cap = 64 * 1024 * 1024          # most conservative (v7x per-TC VMEM)
    return int(cap * 0.7)


def mil_fc_pallas(h, w1, b1, w2, b2, *, tile_n=1024, core_parallel=False,
                  h_buffers=None, single_buffer_weights=True):
    """Per-instance logits (N, C) in f32 via an instance-tiled Pallas kernel."""
    N, D = h.shape
    H = w1.shape[1]
    C = w2.shape[1]
    assert w1.shape == (D, H) and b1.shape == (1, H)
    assert w2.shape == (H, C) and b2.shape == (1, C)

    CP = max(128, -(-C // 128) * 128)    # lane-dense classifier matmul width
    CR = max(8, -(-C // 8) * 8)          # sublane rows actually written back
    w2p = jnp.pad(w2, ((0, 0), (0, CP - C)))
    b2p = jnp.pad(b2, ((0, 0), (0, CP - C)))

    h_item = jnp.dtype(h.dtype).itemsize
    w_item = jnp.dtype(w1.dtype).itemsize
    budget = _vmem_budget_bytes()
    fp = functools.partial(_vmem_footprint_bytes, D=D, H=H, CP=CP, CR=CR,
                           h_item=h_item, w_item=w_item)

    # Instance tile: whole bag if it fits, otherwise a 128-aligned tile (keeps
    # both the h loads and the transposed logit stores lane/sublane dense),
    # shrunk until the double-buffered footprint fits the VMEM budget.
    if N <= tile_n and fp(N) <= budget:
        tn = N
    else:
        tn = max(128, (min(tile_n, N) // 128) * 128)
        while tn > 128 and fp(tn) > budget:
            tn -= 128
    grid = (pl.cdiv(N, tn),)

    vmem_limit = int(min(budget, max(32 * 1024 * 1024, 1.5 * fp(tn) + (2 << 20))))

    # CORE_PARALLEL shards instance tiles across v7x's two TensorCores; "parallel"
    # is the safe default (identical codegen on single-TC v5e/v6e).
    dims = (pltpu.CORE_PARALLEL,) if core_parallel else ("parallel",)

    cost = pl.CostEstimate(
        flops=2 * N * D * H + 2 * N * H * CP,
        transcendentals=0,
        bytes_accessed=(N * D * h_item + (D * H + H) * w_item
                        + (H * CP + CP) * w_item + CR * N * 4),
    )

    def call(use_pipeline_mode):
        w_kw, h_kw = {}, {}
        if use_pipeline_mode:
            if single_buffer_weights:
                w_kw = dict(pipeline_mode=pl.Buffered(1))   # constant index_map
            if h_buffers is not None and h_buffers != 2:
                h_kw = dict(pipeline_mode=pl.Buffered(h_buffers))
        in_specs = [
            pl.BlockSpec((tn, D), lambda i: (i, 0), **h_kw),   # h tile (pipelined)
            pl.BlockSpec((D, H), lambda i: (0, 0), **w_kw),    # weights stay resident
            pl.BlockSpec((1, H), lambda i: (0, 0), **w_kw),
            pl.BlockSpec((H, CP), lambda i: (0, 0), **w_kw),
            pl.BlockSpec((1, CP), lambda i: (0, 0), **w_kw),
        ]
        return pl.pallas_call(
            _mil_fc_kernel,
            out_shape=jax.ShapeDtypeStruct((CR, N), jnp.float32),
            grid_spec=pltpu.PrefetchScalarGridSpec(
                num_scalar_prefetch=0,
                grid=grid,
                in_specs=in_specs,
                out_specs=pl.BlockSpec((CR, tn), lambda i: (0, i)),
            ),
            compiler_params=pltpu.CompilerParams(
                dimension_semantics=dims,
                vmem_limit_bytes=vmem_limit,
            ),
            cost_estimate=cost,
        )(h, w1, b1, w2p, b2p)

    want_pipeline_mode = single_buffer_weights or (h_buffers not in (None, 2))
    if want_pipeline_mode:
        try:
            logits_t = call(True)
        except Exception:
            # pipeline_mode / Buffered(1) unsupported on this jax: default buffering.
            logits_t = call(False)
    else:
        logits_t = call(False)

    # (CR, N) -> (N, C): tiny XLA transpose of only the real class rows.
    return logits_t[:C, :].T


def mil_fc_forward(h, params, top_k=1, return_features=False, tile_n=1024,
                   core_parallel=False):
    """Full MIL_fc.forward semantics (n_classes == 2)."""
    w1, b1, w2, b2 = params
    logits = mil_fc_pallas(h, w1, b1, w2, b2, tile_n=tile_n,
                           core_parallel=core_parallel)          # (N, C) f32

    # Softmax / top-k glue: O(N*C) with C=2, done in plain JAX on the logits.
    y_probs = jax.nn.softmax(logits, axis=1)

    # top_instance_idx = topk(y_probs[:, 1], top_k)[1]
    # NOTE: tie-breaking may differ from torch.topk on exact ties (benign).
    top_instance_idx = jax.lax.top_k(y_probs[:, 1], top_k)[1]
    top_instance = jnp.take(logits, top_instance_idx, axis=0)    # (top_k, C)
    Y_hat = jnp.argmax(top_instance, axis=1, keepdims=True)      # (top_k, 1)
    Y_prob = jax.nn.softmax(top_instance, axis=1)

    results_dict = {}
    if return_features:
        # Recompute fc features only for the selected top-k rows (not all N).
        h_top = jnp.take(h, top_instance_idx, axis=0)
        feats = jnp.maximum(
            jnp.dot(h_top, w1, preferred_element_type=jnp.float32)
            + b1.astype(jnp.float32), 0.0)
        results_dict["features"] = feats

    return top_instance, Y_prob, Y_hat, y_probs, results_dict


def init_params(key, embed_dim, hidden, n_classes, dtype=jnp.float32):
    """Deterministic synthetic init (nn.Linear-style, weights transposed)."""
    k1, k2, k3, k4 = jax.random.split(key, 4)
    s1 = 1.0 / (embed_dim ** 0.5)
    s2 = 1.0 / (hidden ** 0.5)
    w1 = jax.random.uniform(k1, (embed_dim, hidden), jnp.float32, -s1, s1)
    b1 = jax.random.uniform(k2, (1, hidden), jnp.float32, -s1, s1)
    w2 = jax.random.uniform(k3, (hidden, n_classes), jnp.float32, -s2, s2)
    b2 = jax.random.uniform(k4, (1, n_classes), jnp.float32, -s2, s2)
    return tuple(p.astype(dtype) for p in (w1, b1, w2, b2))


if __name__ == "__main__":
    # Small shapes consistent with the module (n_classes=2); N chosen so the
    # tiled grid has 2 steps (tile_n=128) to exercise the pipelined path.
    N, EMBED_DIM, HIDDEN, N_CLASSES = 256, 128, 64, 2

    key = jax.random.PRNGKey(0)
    k_h, k_p = jax.random.split(key)
    h = jax.random.normal(k_h, (N, EMBED_DIM), dtype=jnp.float32)
    params = init_params(k_p, EMBED_DIM, HIDDEN, N_CLASSES)

    top_instance, Y_prob, Y_hat, y_probs, results = mil_fc_forward(
        h, params, top_k=1, return_features=True, tile_n=128)
    jax.block_until_ready((top_instance, Y_prob, Y_hat, y_probs,
                           results["features"]))

    # Shape checks (match the PyTorch module's outputs).
    assert top_instance.shape == (1, N_CLASSES)
    assert Y_prob.shape == (1, N_CLASSES)
    assert Y_hat.shape == (1, 1)
    assert y_probs.shape == (N, N_CLASSES)
    assert results["features"].shape == (1, HIDDEN)

    # Pure-JAX f32 reference check.
    w1, b1, w2, b2 = params
    hp = jax.lax.Precision.HIGHEST
    z_ref = jnp.maximum(jnp.dot(h, w1, precision=hp) + b1, 0.0)
    logits_ref = jnp.dot(z_ref, w2, precision=hp) + b2
    probs_ref = jax.nn.softmax(logits_ref, axis=1)
    assert jnp.allclose(y_probs, probs_ref, atol=2e-3, rtol=2e-3)

    # bf16 producer-dtype path (perf feedback #3): h and weights arrive in bf16
    # from the producer, no wrapper-side casts; f32 accumulation keeps accuracy.
    h_bf = h.astype(jnp.bfloat16)
    params_bf = tuple(p.astype(jnp.bfloat16) for p in params)
    _, _, _, y_probs_bf, _ = mil_fc_forward(h_bf, params_bf, top_k=1, tile_n=128)
    jax.block_until_ready(y_probs_bf)
    assert y_probs_bf.shape == (N, N_CLASSES)
    assert jnp.allclose(y_probs_bf, probs_ref, atol=5e-2)

    print("KERNEL_OK")
</pallas_src>

<mosaic_0001>
module attributes {stable_mosaic.version = 11 : i64} {
  func.func @_mil_fc_kernel(%arg0: i32, %arg1: memref<128x128xf32, #tpu.memory_space<vmem>>, %arg2: memref<128x64xf32, #tpu.memory_space<vmem>>, %arg3: memref<1x64xf32, #tpu.memory_space<vmem>>, %arg4: memref<64x128xf32, #tpu.memory_space<vmem>>, %arg5: memref<1x128xf32, #tpu.memory_space<vmem>>, %arg6: memref<8x128xf32, #tpu.memory_space<vmem>>) attributes {dimension_semantics = [#tpu.dimension_semantics<parallel>], iteration_bounds = array<i64: 2>, scalar_prefetch = 0 : i64, scratch_operands = 0 : i64, tpu.core_type = #tpu.core_type<tc>, window_params = [{transform_indices = @transform_0, window_bounds = array<i64: 128, 128>}, {pipeline_mode = #tpu.pipeline_mode<synchronous>, transform_indices = @transform_1, window_bounds = array<i64: 128, 64>}, {pipeline_mode = #tpu.pipeline_mode<synchronous>, transform_indices = @transform_2, window_bounds = array<i64: 1, 64>}, {pipeline_mode = #tpu.pipeline_mode<synchronous>, transform_indices = @transform_3, window_bounds = array<i64: 64, 128>}, {pipeline_mode = #tpu.pipeline_mode<synchronous>, transform_indices = @transform_4, window_bounds = array<i64: 1, 128>}, {transform_indices = @transform_5, window_bounds = array<i64: 8, 128>}]} {
    %c0 = arith.constant 0 : index
    %c0_0 = arith.constant 0 : index
    %0 = vector.load %arg1[%c0, %c0_0] : memref<128x128xf32, #tpu.memory_space<vmem>>, vector<128x128xf32>
    %c0_1 = arith.constant 0 : index
    %c0_2 = arith.constant 0 : index
    %1 = vector.load %arg2[%c0_1, %c0_2] : memref<128x64xf32, #tpu.memory_space<vmem>>, vector<128x64xf32>
    %cst = arith.constant dense<0.000000e+00> : vector<128x64xf32>
    %2 = tpu.matmul %0, %1, %cst {dimension_numbers = #tpu.dot_dimension_numbers<[1], [0], [0], [1], [0, 0, 1, 1], [], []>} : vector<128x128xf32>, vector<128x64xf32>, vector<128x64xf32> -> vector<128x64xf32>
    %c0_3 = arith.constant 0 : index
    %c0_4 = arith.constant 0 : index
    %3 = vector.load %arg3[%c0_3, %c0_4] : memref<1x64xf32, #tpu.memory_space<vmem>>, vector<1x64xf32>
    %4 = vector.broadcast %3 : vector<1x64xf32> to vector<128x64xf32>
    %5 = arith.addf %2, %4 : vector<128x64xf32>
    %cst_5 = arith.constant 0.000000e+00 : f32
    %6 = vector.broadcast %cst_5 : f32 to vector<128x64xf32>
    %7 = arith.maximumf %5, %6 : vector<128x64xf32>
    %c0_6 = arith.constant 0 : index
    %c0_7 = arith.constant 0 : index
    %8 = vector.load %arg4[%c0_6, %c0_7] : memref<64x128xf32, #tpu.memory_space<vmem>>, vector<64x128xf32>
    %cst_8 = arith.constant dense<0.000000e+00> : vector<128x128xf32>
    %9 = tpu.matmul %7, %8, %cst_8 {dimension_numbers = #tpu.dot_dimension_numbers<[1], [0], [0], [1], [0, 0, 1, 1], [], []>} : vector<128x64xf32>, vector<64x128xf32>, vector<128x128xf32> -> vector<128x128xf32>
    %c0_9 = arith.constant 0 : index
    %c0_10 = arith.constant 0 : index
    %10 = vector.load %arg5[%c0_9, %c0_10] : memref<1x128xf32, #tpu.memory_space<vmem>>, vector<1x128xf32>
    %11 = vector.broadcast %10 : vector<1x128xf32> to vector<128x128xf32>
    %12 = arith.addf %9, %11 : vector<128x128xf32>
    %13 = tpu.transpose %12, [1, 0] : vector<128x128xf32> -> vector<128x128xf32>
    %14 = vector.extract_strided_slice %13 {offsets = [0, 0], sizes = [8, 128], strides = [1, 1]} : vector<128x128xf32> to vector<8x128xf32>
    %c0_11 = arith.constant 0 : index
    %c0_12 = arith.constant 0 : index
    %15 = vector.load %arg6[%c0_11, %c0_12] : memref<8x128xf32, #tpu.memory_space<vmem>>, vector<8x128xf32>
    tpu.vector_store %arg6[%c0_11, %c0_12], %14 {strides = array<i32>} : memref<8x128xf32, #tpu.memory_space<vmem>>, vector<8x128xf32>,
    return
  }
  func.func @transform_0(%arg0: i32) -> (i32, i32) {
    %c0_i32 = arith.constant 0 : i32
    %c0_i32_0 = arith.constant 0 : i32
    return %arg0, %c0_i32 : i32, i32
  }
  func.func @transform_1(%arg0: i32) -> (i32, i32) {
    %c0_i32 = arith.constant 0 : i32
    %c0_i32_0 = arith.constant 0 : i32
    %c0_i32_1 = arith.constant 0 : i32
    return %c0_i32, %c0_i32_0 : i32, i32
  }
  func.func @transform_2(%arg0: i32) -> (i32, i32) {
    %c0_i32 = arith.constant 0 : i32
    %c0_i32_0 = arith.constant 0 : i32
    %c0_i32_1 = arith.constant 0 : i32
    return %c0_i32, %c0_i32_0 : i32, i32
  }
  func.func @transform_3(%arg0: i32) -> (i32, i32) {
    %c0_i32 = arith.constant 0 : i32
    %c0_i32_0 = arith.constant 0 : i32
    %c0_i32_1 = arith.constant 0 : i32
    return %c0_i32, %c0_i32_0 : i32, i32
  }
  func.func @transform_4(%arg0: i32) -> (i32, i32) {
    %c0_i32 = arith.constant 0 : i32
    %c0_i32_0 = arith.constant 0 : i32
    %c0_i32_1 = arith.constant 0 : i32
    return %c0_i32, %c0_i32_0 : i32, i32
  }
  func.func @transform_5(%arg0: i32) -> (i32, i32) {
    %c0_i32 = arith.constant 0 : i32
    %c0_i32_0 = arith.constant 0 : i32
    return %c0_i32, %arg0 : i32, i32
  }
}

module attributes {stable_mosaic.version = 11 : i64} {
  func.func @_mil_fc_kernel(%arg0: i32, %arg1: memref<128x128xf32, #tpu.memory_space<vmem>>, %arg2: memref<128x64xf32, #tpu.memory_space<vmem>>, %arg3: memref<1x64xf32, #tpu.memory_space<vmem>>, %arg4: memref<64x128xf32, #tpu.memory_space<vmem>>, %arg5: memref<1x128xf32, #tpu.memory_space<vmem>>, %arg6: memref<8x128xf32, #tpu.memory_space<vmem>>) attributes {dimension_semantics = [#tpu.dimension_semantics<parallel>], iteration_bounds = array<i64: 2>, scalar_prefetch = 0 : i64, scratch_operands = 0 : i64, tpu.core_type = #tpu.core_type<tc>, window_params = [{transform_indices = @transform_0, window_bounds = array<i64: 128, 128>}, {pipeline_mode = #tpu.pipeline_mode<synchronous>, transform_indices = @transform_1, window_bounds = array<i64: 128, 64>}, {pipeline_mode = #tpu.pipeline_mode<synchronous>, transform_indices = @transform_2, window_bounds = array<i64: 1, 64>}, {pipeline_mode = #tpu.pipeline_mode<synchronous>, transform_indices = @transform_3, window_bounds = array<i64: 64, 128>}, {pipeline_mode = #tpu.pipeline_mode<synchronous>, transform_indices = @transform_4, window_bounds = array<i64: 1, 128>}, {transform_indices = @transform_5, window_bounds = array<i64: 8, 128>}]} {
    %c0 = arith.constant 0 : index
    %c0_0 = arith.constant 0 : index
    %0 = vector.load %arg1[%c0, %c0_0] : memref<128x128xf32, #tpu.memory_space<vmem>>, vector<128x128xf32>
    %c0_1 = arith.constant 0 : index
    %c0_2 = arith.constant 0 : index
    %1 = vector.load %arg2[%c0_1, %c0_2] : memref<128x64xf32, #tpu.memory_space<vmem>>, vector<128x64xf32>
    %cst = arith.constant dense<0.000000e+00> : vector<128x64xf32>
    %2 = tpu.matmul %0, %1, %cst {dimension_numbers = #tpu.dot_dimension_numbers<[1], [0], [0], [1], [0, 0, 1, 1], [], []>} : vector<128x128xf32>, vector<128x64xf32>, vector<128x64xf32> -> vector<128x64xf32>
    %c0_3 = arith.constant 0 : index
    %c0_4 = arith.constant 0 : index
    %3 = vector.load %arg3[%c0_3, %c0_4] : memref<1x64xf32, #tpu.memory_space<vmem>>, vector<1x64xf32>
    %4 = vector.broadcast %3 : vector<1x64xf32> to vector<128x64xf32>
    %5 = arith.addf %2, %4 : vector<128x64xf32>
    %cst_5 = arith.constant 0.000000e+00 : f32
    %6 = vector.broadcast %cst_5 : f32 to vector<128x64xf32>
    %7 = arith.maximumf %5, %6 : vector<128x64xf32>
    %c0_6 = arith.constant 0 : index
    %c0_7 = arith.constant 0 : index
    %8 = vector.load %arg4[%c0_6, %c0_7] : memref<64x128xf32, #tpu.memory_space<vmem>>, vector<64x128xf32>
    %cst_8 = arith.constant dense<0.000000e+00> : vector<128x128xf32>
    %9 = tpu.matmul %7, %8, %cst_8 {dimension_numbers = #tpu.dot_dimension_numbers<[1], [0], [0], [1], [0, 0, 1, 1], [], []>} : vector<128x64xf32>, vector<64x128xf32>, vector<128x128xf32> -> vector<128x128xf32>
    %c0_9 = arith.constant 0 : index
    %c0_10 = arith.constant 0 : index
    %10 = vector.load %arg5[%c0_9, %c0_10] : memref<1x128xf32, #tpu.memory_space<vmem>>, vector<1x128xf32>
    %11 = vector.broadcast %10 : vector<1x128xf32> to vector<128x128xf32>
    %12 = arith.addf %9, %11 : vector<128x128xf32>
    %13 = tpu.transpose %12, [1, 0] : vector<128x128xf32> -> vector<128x128xf32>
    %14 = vector.extract_strided_slice %13 {offsets = [0, 0], sizes = [8, 128], strides = [1, 1]} : vector<128x128xf32> to vector<8x128xf32>
    %c0_11 = arith.constant 0 : index
    %c0_12 = arith.constant 0 : index
    %15 = vector.load %arg6[%c0_11, %c0_12] : memref<8x128xf32, #tpu.memory_space<vmem>>, vector<8x128xf32>
    tpu.vector_store %arg6[%c0_11, %c0_12], %14 {strides = array<i32>} : memref<8x128xf32, #tpu.memory_space<vmem>>, vector<8x128xf32>,
    return
  }
  func.func @transform_0(%arg0: i32) -> (i32, i32) {
    %c0_i32 = arith.constant 0 : i32
    %c0_i32_0 = arith.constant 0 : i32
    return %arg0, %c0_i32 : i32, i32
  }
  func.func @transform_1(%arg0: i32) -> (i32, i32) {
    %c0_i32 = arith.constant 0 : i32
    %c0_i32_0 = arith.constant 0 : i32
    %c0_i32_1 = arith.constant 0 : i32
    return %c0_i32, %c0_i32_0 : i32, i32
  }
  func.func @transform_2(%arg0: i32) -> (i32, i32) {
    %c0_i32 = arith.constant 0 : i32
    %c0_i32_0 = arith.constant 0 : i32
    %c0_i32_1 = arith.constant 0 : i32
    return %c0_i32, %c0_i32_0 : i32, i32
  }
  func.func @transform_3(%arg0: i32) -> (i32, i32) {
    %c0_i32 = arith.constant 0 : i32
    %c0_i32_0 = arith.constant 0 : i32
    %c0_i32_1 = arith.constant 0 : i32
    return %c0_i32, %c0_i32_0 : i32, i32
  }
  func.func @transform_4(%arg0: i32) -> (i32, i32) {
    %c0_i32 = arith.constant 0 : i32
    %c0_i32_0 = arith.constant 0 : i32
    %c0_i32_1 = arith.constant 0 : i32
    return %c0_i32, %c0_i32_0 : i32, i32
  }
  func.func @transform_5(%arg0: i32) -> (i32, i32) {
    %c0_i32 = arith.constant 0 : i32
    %c0_i32_0 = arith.constant 0 : i32
    return %c0_i32, %arg0 : i32, i32
  }
}

</mosaic_0001>

<llo_original>
// kernel: tpu_custom_call.1
$region0: #{tpu_custom_call.1}
  #allocation0 [shape = 'u32[]', space=smem, size = 0x4, offset = 0x4, fixed_abs, tag = 'smem constant byte address 0x4 - core index']
  #allocation1 [shape = 'u32[144,128]{1,0:T(1,128)}', space=vmem, size = 0x12000, scoped, tag = 'internal scratch']
  %s0 = inlined_call_operand.hbm [shape: f32[256,128], index: 0, kind: input, shape index: {}]
  %s1 = inlined_call_operand.vmem [shape: f32[128,64], index: 1, kind: input, shape index: {}]
  %s2 = inlined_call_operand.vmem [shape: f32[1,64], index: 2, kind: input, shape index: {}]
  %s3 = inlined_call_operand.vmem [shape: f32[64,128], index: 3, kind: input, shape index: {}]
  %s4 = inlined_call_operand.vmem [shape: f32[1,128], index: 4, kind: input, shape index: {}]
  %s5 = inlined_call_operand.hbm [shape: f32[8,256], index: 5, kind: output, shape index: {}]
  %s6 = sld [smem:[#allocation0]]
  $region57: #{tpu_custom_call.1} parent=0
    _
  %s8 = ssub.s32 1, %s6
  %s9 = scalar_select 0, %s8, %s6
  $region1: #{tpu_custom_call.1} parent=0
    #allocation2 [shape = 'u8[131072]{0}', space=vmem, size = 0x20000, scoped, tag = 'input window, operand 0']
    #allocation3 [shape = 's32[2]{0}', space=sflag, size = 0x8, scoped, tag = 'scoped memory for tpu_custom_call.1']
    #allocation4 [shape = 's32[2]{0}', space=sflag, size = 0x8, scoped, tag = 'scoped memory for tpu_custom_call.1']
    #allocation5 [shape = 'u8[8192]{0}', space=vmem, size = 0x2000, scoped, tag = 'output window, operand 0']
    %10 = vsyncpa [#allocation3], 0
    %s11 = scalar_lea.sflag [#allocation3], 1
    %12 = vsyncpa %s11, 0
    %13 = vsyncpa [#allocation4], 0
    %s14 = scalar_lea.sflag [#allocation4], 1
    %15 = vsyncpa %s14, 0
    loop: start=0, step=1, limit=4
    $region2: #{tpu_custom_call.1} parent=1 // loop_pre_header
      _
    $region3: #{tpu_custom_call.1} parent=1 // loop_header
      %s17 = sphi 0, %s21
      %p18 = scmp.ge.s32.totalorder %s17, 4
      %s27 = sphi 0, %s29
      %s30 = sphi 0, %s27
      %s31 = sphi 0, %s30
      %s47 = sphi 0, %s31
      %s51 = sphi 0, %s51
      %s53 = sphi 0, %s51
      %s54 = sphi 0, %s53
      %s68 = sphi 0, %s54
      %s72 = sphi 0, %s72
      %s74 = sphi 0, %s72
      %s75 = sphi 0, %s74
      %s89 = sphi 0, %s75
      %s93 = sphi 0, %s93
      %s95 = sphi 0, %s93
      %s96 = sphi 0, %s95
      %s110 = sphi 0, %s96
      %s114 = sphi 0, %s114
      %s116 = sphi 0, %s114
      %s117 = sphi 0, %s116
      %s131 = sphi 0, %s117
      %s137 = sphi 0, %s139
      %s140 = sphi 0, %s137
      %s141 = sphi 0, %s140
      %s157 = sphi 0, %s141
    $region4: #{tpu_custom_call.1} parent=1 // loop_header_branch
      %20 = sbr.rel (%p18) target = $region8
    $region5: #{tpu_custom_call.1} parent=1 // loop_body
      %s22 = ssub.s32 %s17, 1
      %s23 = ssub.s32 %s17, 2
      %s24 = sadd.s32 %s17, 1
      %s25 = ssub.s32 %s17, %s24
      %p26 = scmp.eq.s32.totalorder %s25, 0
      %s28 = sadd.s32 %s27, 1
      %s29 = scalar_select %p26, %s27, %s28
      %p32 = pneg %p26
      %p33 = scmp.eq.s32.totalorder %s17, 1
      %p34 = por %p32, %p33
      %p35 = scmp.ne.s32.totalorder %s27, %s30
      %p36 = scmp.eq.s32.totalorder %s17, 0
      %p37 = por %p35, %p36
      %p38 = scmp.ne.s32.totalorder %s27, %s30
      %p39 = scmp.eq.s32.totalorder %s22, 1
      %p40 = por %p38, %p39
      %p41 = scmp.ne.s32.totalorder %s30, %s31
      %p42 = scmp.eq.s32.totalorder %s22, 0
      %p43 = por %p41, %p42
      %p44 = scmp.ne.s32.totalorder %s30, %s31
      %p45 = scmp.eq.s32.totalorder %s23, 1
      %p46 = por %p44, %p45
      %p48 = scmp.ne.s32.totalorder %s31, %s47
      %p49 = scmp.eq.s32.totalorder %s23, 0
      %p50 = por %p48, %p49
      %s52 = sadd.s32 %s51, 1
      %p55 = scmp.eq.s32.totalorder %s17, 1
      %p56 = scmp.ne.s32.totalorder %s51, %s53
      %p57 = scmp.eq.s32.totalorder %s17, 0
      %p58 = por %p56, %p57
      %p59 = scmp.ne.s32.totalorder %s51, %s53
      %p60 = scmp.eq.s32.totalorder %s22, 1
      %p61 = por %p59, %p60
      %p62 = scmp.ne.s32.totalorder %s53, %s54
      %p63 = scmp.eq.s32.totalorder %s22, 0
      %p64 = por %p62, %p63
      %p65 = scmp.ne.s32.totalorder %s53, %s54
      %p66 = scmp.eq.s32.totalorder %s23, 1
      %p67 = por %p65, %p66
      %p69 = scmp.ne.s32.totalorder %s54, %s68
      %p70 = scmp.eq.s32.totalorder %s23, 0
      %p71 = por %p69, %p70
      %s73 = sadd.s32 %s72, 1
      %p76 = scmp.eq.s32.totalorder %s17, 1
      %p77 = scmp.ne.s32.totalorder %s72, %s74
      %p78 = scmp.eq.s32.totalorder %s17, 0
      %p79 = por %p77, %p78
      %p80 = scmp.ne.s32.totalorder %s72, %s74
      %p81 = scmp.eq.s32.totalorder %s22, 1
      %p82 = por %p80, %p81
      %p83 = scmp.ne.s32.totalorder %s74, %s75
      %p84 = scmp.eq.s32.totalorder %s22, 0
      %p85 = por %p83, %p84
      %p86 = scmp.ne.s32.totalorder %s74, %s75
      %p87 = scmp.eq.s32.totalorder %s23, 1
      %p88 = por %p86, %p87
      %p90 = scmp.ne.s32.totalorder %s75, %s89
      %p91 = scmp.eq.s32.totalorder %s23, 0
      %p92 = por %p90, %p91
      %s94 = sadd.s32 %s93, 1
      %p97 = scmp.eq.s32.totalorder %s17, 1
      %p98 = scmp.ne.s32.totalorder %s93, %s95
      %p99 = scmp.eq.s32.totalorder %s17, 0
      %p100 = por %p98, %p99
      %p101 = scmp.ne.s32.totalorder %s93, %s95
      %p102 = scmp.eq.s32.totalorder %s22, 1
      %p103 = por %p101, %p102
      %p104 = scmp.ne.s32.totalorder %s95, %s96
      %p105 = scmp.eq.s32.totalorder %s22, 0
      %p106 = por %p104, %p105
      %p107 = scmp.ne.s32.totalorder %s95, %s96
      %p108 = scmp.eq.s32.totalorder %s23, 1
      %p109 = por %p107, %p108
      %p111 = scmp.ne.s32.totalorder %s96, %s110
      %p112 = scmp.eq.s32.totalorder %s23, 0
      %p113 = por %p111, %p112
      %s115 = sadd.s32 %s114, 1
      %p118 = scmp.eq.s32.totalorder %s17, 1
      %p119 = scmp.ne.s32.totalorder %s114, %s116
      %p120 = scmp.eq.s32.totalorder %s17, 0
      %p121 = por %p119, %p120
      %p122 = scmp.ne.s32.totalorder %s114, %s116
      %p123 = scmp.eq.s32.totalorder %s22, 1
      %p124 = por %p122, %p123
      %p125 = scmp.ne.s32.totalorder %s116, %s117
      %p126 = scmp.eq.s32.totalorder %s22, 0
      %p127 = por %p125, %p126
      %p128 = scmp.ne.s32.totalorder %s116, %s117
      %p129 = scmp.eq.s32.totalorder %s23, 1
      %p130 = por %p128, %p129
      %p132 = scmp.ne.s32.totalorder %s117, %s131
      %p133 = scmp.eq.s32.totalorder %s23, 0
      %p134 = por %p132, %p133
      %s135 = ssub.s32 %s17, %s24
      %p136 = scmp.eq.s32.totalorder %s135, 0
      %s138 = sadd.s32 %s137, 1
      %s139 = scalar_select %p136, %s137, %s138
      %p142 = pneg %p136
      %p143 = scmp.eq.s32.totalorder %s17, 1
      %p144 = por %p142, %p143
      %p145 = scmp.ne.s32.totalorder %s137, %s140
      %p146 = scmp.eq.s32.totalorder %s17, 0
      %p147 = por %p145, %p146
      %p148 = scmp.ne.s32.totalorder %s137, %s140
      %p149 = scmp.eq.s32.totalorder %s22, 1
      %p150 = por %p148, %p149
      %p151 = scmp.ne.s32.totalorder %s140, %s141
      %p152 = scmp.eq.s32.totalorder %s22, 0
      %p153 = por %p151, %p152
      %p154 = scmp.ne.s32.totalorder %s140, %s141
      %p155 = scmp.eq.s32.totalorder %s23, 1
      %p156 = por %p154, %p155
      %p158 = scmp.ne.s32.totalorder %s141, %s157
      %p159 = scmp.eq.s32.totalorder %s23, 0
      %p160 = por %p158, %p159
      %p161 = scmp.le.s32.totalorder 1, %s17
      %p162 = scmp.lt.s32.totalorder %s17, 3
      %p163 = pnand %p161, %p162
      %p164 = pneg %p163
      // Predicated region
      $region9: #{tpu_custom_call.1} parent=5 // pred_check
        _
      $region10: #{tpu_custom_call.1} parent=5 // pred_check_branch
        %166 = sbr.rel (%p163) target = $region12
      $region11: #{tpu_custom_call.1} parent=5 // pred_region
        %s167 = ssub.s32 %s17, 1
        // Predicated region
        $region13: #{tpu_custom_call.1} parent=11 // pred_check
          %p168 = pneg %p64
        $region14: #{tpu_custom_call.1} parent=11 // pred_check_branch
          %170 = sbr.rel (%p168) target = $region16
        $region15: #{tpu_custom_call.1} parent=11 // pred_region
          _
        $region16: #{tpu_custom_call.1} parent=11 // pred_fallthru
          _
        // Predicated region
        $region17: #{tpu_custom_call.1} parent=11 // pred_check
          %p171 = pneg %p85
        $region18: #{tpu_custom_call.1} parent=11 // pred_check_branch
          %173 = sbr.rel (%p171) target = $region20
        $region19: #{tpu_custom_call.1} parent=11 // pred_region
          _
        $region20: #{tpu_custom_call.1} parent=11 // pred_fallthru
          _
        // Predicated region
        $region21: #{tpu_custom_call.1} parent=11 // pred_check
          %p174 = pneg %p106
        $region22: #{tpu_custom_call.1} parent=11 // pred_check_branch
          %176 = sbr.rel (%p174) target = $region24
        $region23: #{tpu_custom_call.1} parent=11 // pred_region
          _
        $region24: #{tpu_custom_call.1} parent=11 // pred_fallthru
          _
        // Predicated region
        $region25: #{tpu_custom_call.1} parent=11 // pred_check
          %p177 = pneg %p127
        $region26: #{tpu_custom_call.1} parent=11 // pred_check_branch
          %179 = sbr.rel (%p177) target = $region28
        $region27: #{tpu_custom_call.1} parent=11 // pred_region
          _
        $region28: #{tpu_custom_call.1} parent=11 // pred_fallthru
          _
      $region12: #{tpu_custom_call.1} parent=5 // pred_fallthru
        _
      %p180 = scmp.lt.s32.totalorder %s17, 2
      // Predicated region
      $region29: #{tpu_custom_call.1} parent=5 // pred_check
        %p181 = pneg %p180
      $region30: #{tpu_custom_call.1} parent=5 // pred_check_branch
        %183 = sbr.rel (%p181) target = $region32
      $region31: #{tpu_custom_call.1} parent=5 // pred_region
        // Predicated region
        $region33: #{tpu_custom_call.1} parent=31 // pred_check
          %p184 = pneg %p37
        $region34: #{tpu_custom_call.1} parent=31 // pred_check_branch
          %186 = sbr.rel (%p184) target = $region36
        $region35: #{tpu_custom_call.1} parent=31 // pred_region
          %s187 = sand.u32 %s27, 1
          %s188 = scalar_lea.sflag [#allocation3], %s187
          %s189 = sand.u32 %s27, 1
          %s190 = smul.addr %s189, 128
          %s191 = scalar_lea.vmem [#allocation2], %s190
          %s192 = smul.u32 16, %s17
          %s194 = ssub.s32 2048, 2048
          %195 = vsyncadd %s188, %s194
          %s196 = smul.addr %s192, 128
          %s197 = scalar_lea.hbm %s0, %s196
          %s198 = sshll.u32 %s191, 4
          %s199 = int_to_ptr.vmem [resolvable:$true] %s198
          %204 = dma.hbm_to_vmem [thread:$0]  %s197, 2048, %s199, %s188, 128, 128, 8
        $region36: #{tpu_custom_call.1} parent=31 // pred_fallthru
          _
      $region32: #{tpu_custom_call.1} parent=5 // pred_fallthru
        _
      %p205 = scmp.le.s32.totalorder 1, %s17
      %p206 = scmp.lt.s32.totalorder %s17, 3
      %p207 = pnand %p205, %p206
      %p208 = pneg %p207
      // Predicated region
      $region37: #{tpu_custom_call.1} parent=5 // pred_check
        _
      $region38: #{tpu_custom_call.1} parent=5 // pred_check_branch
        %210 = sbr.rel (%p207) target = $region40
      $region39: #{tpu_custom_call.1} parent=5 // pred_region
        %s211 = ssub.s32 %s17, 1
        %s212 = sand.u32 %s30, 1
        %s213 = scalar_lea.sflag [#allocation3], %s212
        %s214 = sand.u32 %s30, 1
        %s215 = smul.addr %s214, 128
        %s216 = scalar_lea.vmem [#allocation2], %s215
        // Predicated region
        $region41: #{tpu_custom_call.1} parent=39 // pred_check
          %p217 = pneg %p43
        $region42: #{tpu_custom_call.1} parent=39 // pred_check_branch
          %219 = sbr.rel (%p217) target = $region44
        $region43: #{tpu_custom_call.1} parent=39 // pred_region
          %220 = dma.done %s213, 2048
        $region44: #{tpu_custom_call.1} parent=39 // pred_fallthru
          _
        %s221 = sand.u32 %s30, 1
        %s222 = scalar_lea.sflag [#allocation3], %s221
        %s223 = sand.u32 %s30, 1
        %s224 = smul.addr %s223, 128
        %s225 = scalar_lea.vmem [#allocation2], %s224
        %p226 = pneg %p43
        %p227 = pneg %p40
        %p228 = pneg %p64
        %p229 = pneg %p61
        %p230 = pneg %p85
        %p231 = pneg %p82
        %p232 = pneg %p106
        %p233 = pneg %p103
        %p234 = pneg %p127
        %p235 = pneg %p124
        %p236 = pneg %p153
        %p237 = pneg %p150
        %s238 = sand.u32 %s140, 1
        %s239 = scalar_lea.sflag [#allocation4], %s238
        %s240 = sand.u32 %s140, 1
        %s241 = smul.addr %s240, 8
        %s242 = scalar_lea.vmem [#allocation5], %s241
        %s243 = smul.u32 16, %s22
        %v244 = vld [vmem:[%s216] sm:$0xff]
        %v245 = vld [vmem:[%s216 + $0x8] sm:$0xff]
        %v246 = vld [vmem:[%s216 + $0x10] sm:$0xff]
        %v247 = vld [vmem:[%s216 + $0x18] sm:$0xff]
        %v248 = vld [vmem:[%s216 + $0x20] sm:$0xff]
        %v249 = vld [vmem:[%s216 + $0x28] sm:$0xff]
        %v250 = vld [vmem:[%s216 + $0x30] sm:$0xff]
        %v251 = vld [vmem:[%s216 + $0x38] sm:$0xff]
        %v252 = vld [vmem:[%s216 + $0x40] sm:$0xff]
        %v253 = vld [vmem:[%s216 + $0x48] sm:$0xff]
        %v254 = vld [vmem:[%s216 + $0x50] sm:$0xff]
        %v255 = vld [vmem:[%s216 + $0x58] sm:$0xff]
        %v256 = vld [vmem:[%s216 + $0x60] sm:$0xff]
        %v257 = vld [vmem:[%s216 + $0x68] sm:$0xff]
        %v258 = vld [vmem:[%s216 + $0x70] sm:$0xff]
        %v259 = vld [vmem:[%s216 + $0x78] sm:$0xff]
        %v260 = vld [vmem:[%s1] sm:$0xff]
        %v261 = vld [vmem:[%s1 + $0x8] sm:$0xff]
        %v262 = vld [vmem:[%s1 + $0x10] sm:$0xff]
        %v263 = vld [vmem:[%s1 + $0x18] sm:$0xff]
        %v264 = vld [vmem:[%s1 + $0x20] sm:$0xff]
        %v265 = vld [vmem:[%s1 + $0x28] sm:$0xff]
        %v266 = vld [vmem:[%s1 + $0x30] sm:$0xff]
        %v267 = vld [vmem:[%s1 + $0x38] sm:$0xff]
        %v268 = vld [vmem:[%s1 + $0x40] sm:$0xff]
        %v269 = vld [vmem:[%s1 + $0x48] sm:$0xff]
        %v270 = vld [vmem:[%s1 + $0x50] sm:$0xff]
        %v271 = vld [vmem:[%s1 + $0x58] sm:$0xff]
        %v272 = vld [vmem:[%s1 + $0x60] sm:$0xff]
        %v273 = vld [vmem:[%s1 + $0x68] sm:$0xff]
        %v274 = vld [vmem:[%s1 + $0x70] sm:$0xff]
        %v275 = vld [vmem:[%s1 + $0x78] sm:$0xff]
        %v276 = vld [vmem:[%s2] sm:$0x1]
        %v278 = vlaneseq
        %v279 = vshrl.u32 %v278, 7
        %v280 = vsub.s32 0, %v279
        %v281 = vrot.slane %v276, %v280
        %283 = vmatprep.subr.mxu0 0.0
        %284 = vmatpush1.msra.mxu0 %v260
        %285 = vmatprep.subr.mxu0 0.0
        %286 = vmatpush1.msra.mxu0 %v261
        %287 = vmatprep.subr.mxu0 0.0
        %288 = vmatpush1.msra.mxu0 %v262
        %289 = vmatprep.subr.mxu0 0.0
        %290 = vmatpush1.msra.mxu0 %v263
        %291 = vmatprep.subr.mxu0 0.0
        %292 = vmatpush1.msra.mxu0 %v264
        %293 = vmatprep.subr.mxu0 0.0
        %294 = vmatpush1.msra.mxu0 %v265
        %295 = vmatprep.subr.mxu0 0.0
        %296 = vmatpush1.msra.mxu0 %v266
        %297 = vmatprep.subr.mxu0 0.0
        %298 = vmatpush1.msra.mxu0 %v267
        %299 = vmatprep.subr.mxu0 0.0
        %300 = vmatpush1.msra.mxu0 %v268
        %301 = vmatprep.subr.mxu0 0.0
        %302 = vmatpush1.msra.mxu0 %v269
        %303 = vmatprep.subr.mxu0 0.0
        %304 = vmatpush1.msra.mxu0 %v270
        %305 = vmatprep.subr.mxu0 0.0
        %306 = vmatpush1.msra.mxu0 %v271
        %307 = vmatprep.subr.mxu0 0.0
        %308 = vmatpush1.msra.mxu0 %v272
        %309 = vmatprep.subr.mxu0 0.0
        %310 = vmatpush1.msra.mxu0 %v273
        %311 = vmatprep.subr.mxu0 0.0
        %312 = vmatpush1.msra.mxu0 %v274
        %313 = vmatprep.subr.mxu0 0.0
        %314 = vmatpush1.msra.mxu0 %v275
        %315 = vmatprep.subr.mxu0 0.0
        %316 = vmatpush1.msra.mxu0 0.0
        %317 = vmatprep.subr.mxu0 0.0
        %318 = vmatpush1.msra.mxu0 0.0
        %319 = vmatprep.subr.mxu0 0.0
        %320 = vmatpush1.msra.mxu0 0.0
        %321 = vmatprep.subr.mxu0 0.0
        %322 = vmatpush1.msra.mxu0 0.0
        %323 = vmatprep.subr.mxu0 0.0
        %324 = vmatpush1.msra.mxu0 0.0
        %325 = vmatprep.subr.mxu0 0.0
        %326 = vmatpush1.msra.mxu0 0.0
        %327 = vmatprep.subr.mxu0 0.0
        %328 = vmatpush1.msra.mxu0 0.0
        %329 = vmatprep.subr.mxu0 0.0
        %330 = vmatpush1.msra.mxu0 0.0
        %331 = vmatprep.subr.mxu0 0.0
        %332 = vmatpush1.msra.mxu0 0.0
        %333 = vmatprep.subr.mxu0 0.0
        %334 = vmatpush1.msra.mxu0 0.0
        %335 = vmatprep.subr.mxu0 0.0
        %336 = vmatpush1.msra.mxu0 0.0
        %337 = vmatprep.subr.mxu0 0.0
        %338 = vmatpush1.msra.mxu0 0.0
        %339 = vmatprep.subr.mxu0 0.0
        %340 = vmatpush1.msra.mxu0 0.0
        %341 = vmatprep.subr.mxu0 0.0
        %342 = vmatpush1.msra.mxu0 0.0
        %343 = vmatprep.subr.mxu0 0.0
        %344 = vmatpush1.msra.mxu0 0.0
        %345 = vmatprep.subr.mxu0 0.0
        %346 = vmatpush1.msra.mxu0 0.0
        %347 = vmatprep.mubr.f32.mxu0 0.0
        %348 = vmatmul.mubr.f32.gmra.mrb[0].mxu0 %v244
        %v349 = vpop.f32.mrb[0].mxu0
        %v350 = vadd.f32 %v281, %v349
        %v351 = vpop.f32.mrb[0].mxu0
        %352 = vmatprep.mubr.f32.mxu0 0.0
        %353 = vmatmul.mubr.f32.gmra.mrb[0].mxu0 %v245
        %v354 = vpop.f32.mrb[0].mxu0
        %v355 = vadd.f32 %v281, %v354
        %v356 = vpop.f32.mrb[0].mxu0
        %357 = vmatprep.mubr.f32.mxu0 0.0
        %358 = vmatmul.mubr.f32.gmra.mrb[0].mxu0 %v246
        %v359 = vpop.f32.mrb[0].mxu0
        %v360 = vadd.f32 %v281, %v359
        %v361 = vpop.f32.mrb[0].mxu0
        %362 = vmatprep.mubr.f32.mxu0 0.0
        %363 = vmatmul.mubr.f32.gmra.mrb[0].mxu0 %v247
        %v364 = vpop.f32.mrb[0].mxu0
        %v365 = vadd.f32 %v281, %v364
        %v366 = vpop.f32.mrb[0].mxu0
        %367 = vmatprep.mubr.f32.mxu0 0.0
        %368 = vmatmul.mubr.f32.gmra.mrb[0].mxu0 %v248
        %v369 = vpop.f32.mrb[0].mxu0
        %v370 = vadd.f32 %v281, %v369
        %v371 = vpop.f32.mrb[0].mxu0
        %372 = vmatprep.mubr.f32.mxu0 0.0
        %373 = vmatmul.mubr.f32.gmra.mrb[0].mxu0 %v249
        %v374 = vpop.f32.mrb[0].mxu0
        %v375 = vadd.f32 %v281, %v374
        %v376 = vpop.f32.mrb[0].mxu0
        %377 = vmatprep.mubr.f32.mxu0 0.0
        %378 = vmatmul.mubr.f32.gmra.mrb[0].mxu0 %v250
        %v379 = vpop.f32.mrb[0].mxu0
        %v380 = vadd.f32 %v281, %v379
        %v381 = vpop.f32.mrb[0].mxu0
        %382 = vmatprep.mubr.f32.mxu0 0.0
        %383 = vmatmul.mubr.f32.gmra.mrb[0].mxu0 %v251
        %v384 = vpop.f32.mrb[0].mxu0
        %v385 = vadd.f32 %v281, %v384
        %v386 = vpop.f32.mrb[0].mxu0
        %387 = vmatprep.mubr.f32.mxu0 0.0
        %388 = vmatmul.mubr.f32.gmra.mrb[0].mxu0 %v252
        %v389 = vpop.f32.mrb[0].mxu0
        %v390 = vadd.f32 %v281, %v389
        %v391 = vpop.f32.mrb[0].mxu0
        %392 = vmatprep.mubr.f32.mxu0 0.0
        %393 = vmatmul.mubr.f32.gmra.mrb[0].mxu0 %v253
        %v394 = vpop.f32.mrb[0].mxu0
        %v395 = vadd.f32 %v281, %v394
        %v396 = vpop.f32.mrb[0].mxu0
        %397 = vmatprep.mubr.f32.mxu0 0.0
        %398 = vmatmul.mubr.f32.gmra.mrb[0].mxu0 %v254
        %v399 = vpop.f32.mrb[0].mxu0
        %v400 = vadd.f32 %v281, %v399
        %v401 = vpop.f32.mrb[0].mxu0
        %402 = vmatprep.mubr.f32.mxu0 0.0
        %403 = vmatmul.mubr.f32.gmra.mrb[0].mxu0 %v255
        %v404 = vpop.f32.mrb[0].mxu0
        %v405 = vadd.f32 %v281, %v404
        %v406 = vpop.f32.mrb[0].mxu0
        %407 = vmatprep.mubr.f32.mxu0 0.0
        %408 = vmatmul.mubr.f32.gmra.mrb[0].mxu0 %v256
        %v409 = vpop.f32.mrb[0].mxu0
        %v410 = vadd.f32 %v281, %v409
        %v411 = vpop.f32.mrb[0].mxu0
        %412 = vmatprep.mubr.f32.mxu0 0.0
        %413 = vmatmul.mubr.f32.gmra.mrb[0].mxu0 %v257
        %v414 = vpop.f32.mrb[0].mxu0
        %v415 = vadd.f32 %v281, %v414
        %v416 = vpop.f32.mrb[0].mxu0
        %417 = vmatprep.mubr.f32.mxu0 0.0
        %418 = vmatmul.mubr.f32.gmra.mrb[0].mxu0 %v258
        %v419 = vpop.f32.mrb[0].mxu0
        %v420 = vadd.f32 %v281, %v419
        %v421 = vpop.f32.mrb[0].mxu0
        %422 = vmatprep.mubr.f32.mxu0 0.0
        %423 = vmatmul.mubr.f32.gmra.mrb[0].mxu0 %v259
        %v424 = vpop.f32.mrb[0].mxu0
        %v425 = vadd.f32 %v281, %v424
        %v426 = vpop.f32.mrb[0].mxu0
        %427 = vdwg.mxu0
        %v428 = vmax.f32 %v350, 0.0
        %v429 = vmax.f32 %v355, 0.0
        %v430 = vmax.f32 %v360, 0.0
        %v431 = vmax.f32 %v365, 0.0
        %v432 = vmax.f32 %v370, 0.0
        %v433 = vmax.f32 %v375, 0.0
        %v434 = vmax.f32 %v380, 0.0
        %v435 = vmax.f32 %v385, 0.0
        %v436 = vmax.f32 %v390, 0.0
        %v437 = vmax.f32 %v395, 0.0
        %v438 = vmax.f32 %v400, 0.0
        %v439 = vmax.f32 %v405, 0.0
        %v440 = vmax.f32 %v410, 0.0
        %v441 = vmax.f32 %v415, 0.0
        %v442 = vmax.f32 %v420, 0.0
        %v443 = vmax.f32 %v425, 0.0
        %v444 = vld [vmem:[%s3] sm:$0xff]
        %v445 = vld [vmem:[%s3 + $0x8] sm:$0xff]
        %v446 = vld [vmem:[%s3 + $0x10] sm:$0xff]
        %v447 = vld [vmem:[%s3 + $0x18] sm:$0xff]
        %v448 = vld [vmem:[%s3 + $0x20] sm:$0xff]
        %v449 = vld [vmem:[%s3 + $0x28] sm:$0xff]
        %v450 = vld [vmem:[%s3 + $0x30] sm:$0xff]
        %v451 = vld [vmem:[%s3 + $0x38] sm:$0xff]
        %v452 = vld [vmem:[%s4] sm:$0x1]
        %v454 = vlaneseq
        %v455 = vshrl.u32 %v454, 7
        %v456 = vsub.s32 0, %v455
        %v457 = vrot.slane %v452, %v456
        %vm459 = vcmask 523264
        %v461 = vsel %vm459, %v428, 0
        %v464 = vsel %vm459, %v429, 0
        %v467 = vsel %vm459, %v430, 0
        %v470 = vsel %vm459, %v431, 0
        %v473 = vsel %vm459, %v432, 0
        %v476 = vsel %vm459, %v433, 0
        %v479 = vsel %vm459, %v434, 0
        %v482 = vsel %vm459, %v435, 0
        %v485 = vsel %vm459, %v436, 0
        %v488 = vsel %vm459, %v437, 0
        %v491 = vsel %vm459, %v438, 0
        %v494 = vsel %vm459, %v439, 0
        %v497 = vsel %vm459, %v440, 0
        %v500 = vsel %vm459, %v441, 0
        %v503 = vsel %vm459, %v442, 0
        %v506 = vsel %vm459, %v443, 0
        %508 = vmatprep.subr.mxu0 0.0
        %509 = vmatpush1.msra.mxu0 %v444
        %510 = vmatprep.subr.mxu0 0.0
        %511 = vmatpush1.msra.mxu0 %v445
        %512 = vmatprep.subr.mxu0 0.0
        %513 = vmatpush1.msra.mxu0 %v446
        %514 = vmatprep.subr.mxu0 0.0
        %515 = vmatpush1.msra.mxu0 %v447
        %516 = vmatprep.subr.mxu0 0.0
        %517 = vmatpush1.msra.mxu0 %v448
        %518 = vmatprep.subr.mxu0 0.0
        %519 = vmatpush1.msra.mxu0 %v449
        %520 = vmatprep.subr.mxu0 0.0
        %521 = vmatpush1.msra.mxu0 %v450
        %522 = vmatprep.subr.mxu0 0.0
        %523 = vmatpush1.msra.mxu0 %v451
        %524 = vmatprep.subr.mxu0 0.0
        %525 = vmatpush1.msra.mxu0 0.0
        %526 = vmatprep.subr.mxu0 0.0
        %527 = vmatpush1.msra.mxu0 0.0
        %528 = vmatprep.subr.mxu0 0.0
        %529 = vmatpush1.msra.mxu0 0.0
        %530 = vmatprep.subr.mxu0 0.0
        %531 = vmatpush1.msra.mxu0 0.0
        %532 = vmatprep.subr.mxu0 0.0
        %533 = vmatpush1.msra.mxu0 0.0
        %534 = vmatprep.subr.mxu0 0.0
        %535 = vmatpush1.msra.mxu0 0.0
        %536 = vmatprep.subr.mxu0 0.0
        %537 = vmatpush1.msra.mxu0 0.0
        %538 = vmatprep.subr.mxu0 0.0
        %539 = vmatpush1.msra.mxu0 0.0
        %540 = vmatprep.subr.mxu0 0.0
        %541 = vmatpush1.msra.mxu0 0.0
        %542 = vmatprep.subr.mxu0 0.0
        %543 = vmatpush1.msra.mxu0 0.0
        %544 = vmatprep.subr.mxu0 0.0
        %545 = vmatpush1.msra.mxu0 0.0
        %546 = vmatprep.subr.mxu0 0.0
        %547 = vmatpush1.msra.mxu0 0.0
        %548 = vmatprep.subr.mxu0 0.0
        %549 = vmatpush1.msra.mxu0 0.0
        %550 = vmatprep.subr.mxu0 0.0
        %551 = vmatpush1.msra.mxu0 0.0
        %552 = vmatprep.subr.mxu0 0.0
        %553 = vmatpush1.msra.mxu0 0.0
        %554 = vmatprep.subr.mxu0 0.0
        %555 = vmatpush1.msra.mxu0 0.0
        %556 = vmatprep.subr.mxu0 0.0
        %557 = vmatpush1.msra.mxu0 0.0
        %558 = vmatprep.subr.mxu0 0.0
        %559 = vmatpush1.msra.mxu0 0.0
        %560 = vmatprep.subr.mxu0 0.0
        %561 = vmatpush1.msra.mxu0 0.0
        %562 = vmatprep.subr.mxu0 0.0
        %563 = vmatpush1.msra.mxu0 0.0
        %564 = vmatprep.subr.mxu0 0.0
        %565 = vmatpush1.msra.mxu0 0.0
        %566 = vmatprep.subr.mxu0 0.0
        %567 = vmatpush1.msra.mxu0 0.0
        %568 = vmatprep.subr.mxu0 0.0
        %569 = vmatpush1.msra.mxu0 0.0
        %570 = vmatprep.subr.mxu0 0.0
        %571 = vmatpush1.msra.mxu0 0.0
        %572 = vmatprep.mubr.f32.mxu0 0.0
        %573 = vmatmul.mubr.f32.gmra.mrb[0].mxu0 %v461
        %v574 = vpop.f32.mrb[0].mxu0
        %v575 = vadd.f32 %v457, %v574
        %v576 = vpop.f32.mrb[0].mxu0
        %577 = vmatprep.mubr.f32.mxu0 0.0
        %578 = vmatmul.mubr.f32.gmra.mrb[0].mxu0 %v464
        %v579 = vpop.f32.mrb[0].mxu0
        %v580 = vadd.f32 %v457, %v579
        %v581 = vpop.f32.mrb[0].mxu0
        %582 = vmatprep.mubr.f32.mxu0 0.0
        %583 = vmatmul.mubr.f32.gmra.mrb[0].mxu0 %v467
        %v584 = vpop.f32.mrb[0].mxu0
        %v585 = vadd.f32 %v457, %v584
        %v586 = vpop.f32.mrb[0].mxu0
        %587 = vmatprep.mubr.f32.mxu0 0.0
        %588 = vmatmul.mubr.f32.gmra.mrb[0].mxu0 %v470
        %v589 = vpop.f32.mrb[0].mxu0
        %v590 = vadd.f32 %v457, %v589
        %v591 = vpop.f32.mrb[0].mxu0
        %592 = vmatprep.mubr.f32.mxu0 0.0
        %593 = vmatmul.mubr.f32.gmra.mrb[0].mxu0 %v473
        %v594 = vpop.f32.mrb[0].mxu0
        %v595 = vadd.f32 %v457, %v594
        %v596 = vpop.f32.mrb[0].mxu0
        %597 = vmatprep.mubr.f32.mxu0 0.0
        %598 = vmatmul.mubr.f32.gmra.mrb[0].mxu0 %v476
        %v599 = vpop.f32.mrb[0].mxu0
        %v600 = vadd.f32 %v457, %v599
        %v601 = vpop.f32.mrb[0].mxu0
        %602 = vmatprep.mubr.f32.mxu0 0.0
        %603 = vmatmul.mubr.f32.gmra.mrb[0].mxu0 %v479
        %v604 = vpop.f32.mrb[0].mxu0
        %v605 = vadd.f32 %v457, %v604
        %v606 = vpop.f32.mrb[0].mxu0
        %607 = vmatprep.mubr.f32.mxu0 0.0
        %608 = vmatmul.mubr.f32.gmra.mrb[0].mxu0 %v482
        %v609 = vpop.f32.mrb[0].mxu0
        %v610 = vadd.f32 %v457, %v609
        %v611 = vpop.f32.mrb[0].mxu0
        %612 = vmatprep.mubr.f32.mxu0 0.0
        %613 = vmatmul.mubr.f32.gmra.mrb[0].mxu0 %v485
        %v614 = vpop.f32.mrb[0].mxu0
        %v615 = vadd.f32 %v457, %v614
        %v616 = vpop.f32.mrb[0].mxu0
        %617 = vmatprep.mubr.f32.mxu0 0.0
        %618 = vmatmul.mubr.f32.gmra.mrb[0].mxu0 %v488
        %v619 = vpop.f32.mrb[0].mxu0
        %v620 = vadd.f32 %v457, %v619
        %v621 = vpop.f32.mrb[0].mxu0
        %622 = vmatprep.mubr.f32.mxu0 0.0
        %623 = vmatmul.mubr.f32.gmra.mrb[0].mxu0 %v491
        %v624 = vpop.f32.mrb[0].mxu0
        %v625 = vadd.f32 %v457, %v624
        %v626 = vpop.f32.mrb[0].mxu0
        %627 = vmatprep.mubr.f32.mxu0 0.0
        %628 = vmatmul.mubr.f32.gmra.mrb[0].mxu0 %v494
        %v629 = vpop.f32.mrb[0].mxu0
        %v630 = vadd.f32 %v457, %v629
        %v631 = vpop.f32.mrb[0].mxu0
        %632 = vmatprep.mubr.f32.mxu0 0.0
        %633 = vmatmul.mubr.f32.gmra.mrb[0].mxu0 %v497
        %v634 = vpop.f32.mrb[0].mxu0
        %v635 = vadd.f32 %v457, %v634
        %v636 = vpop.f32.mrb[0].mxu0
        %637 = vmatprep.mubr.f32.mxu0 0.0
        %638 = vmatmul.mubr.f32.gmra.mrb[0].mxu0 %v500
        %v639 = vpop.f32.mrb[0].mxu0
        %v640 = vadd.f32 %v457, %v639
        %v641 = vpop.f32.mrb[0].mxu0
        %642 = vmatprep.mubr.f32.mxu0 0.0
        %643 = vmatmul.mubr.f32.gmra.mrb[0].mxu0 %v503
        %v644 = vpop.f32.mrb[0].mxu0
        %v645 = vadd.f32 %v457, %v644
        %v646 = vpop.f32.mrb[0].mxu0
        %647 = vmatprep.mubr.f32.mxu0 0.0
        %648 = vmatmul.mubr.f32.gmra.mrb[0].mxu0 %v506
        %v649 = vpop.f32.mrb[0].mxu0
        %v650 = vadd.f32 %v457, %v649
        %v651 = vpop.f32.mrb[0].mxu0
        %652 = vdwg.mxu0
        %653 = vxpose.xlu0.b32.start [1/16] %v575, 128
        %654 = vxpose.xlu0.b32.cont [2/16] %v580, 128
        %655 = vxpose.xlu0.b32.cont [3/16] %v585, 128
        %656 = vxpose.xlu0.b32.cont [4/16] %v590, 128
        %657 = vxpose.xlu0.b32.cont [5/16] %v595, 128
        %658 = vxpose.xlu0.b32.cont [6/16] %v600, 128
        %659 = vxpose.xlu0.b32.cont [7/16] %v605, 128
        %660 = vxpose.xlu0.b32.cont [8/16] %v610, 128
        %661 = vxpose.xlu0.b32.cont [9/16] %v615, 128
        %662 = vxpose.xlu0.b32.cont [10/16] %v620, 128
        %663 = vxpose.xlu0.b32.cont [11/16] %v625, 128
        %664 = vxpose.xlu0.b32.cont [12/16] %v630, 128
        %665 = vxpose.xlu0.b32.cont [13/16] %v635, 128
        %666 = vxpose.xlu0.b32.cont [14/16] %v640, 128
        %667 = vxpose.xlu0.b32.cont [15/16] %v645, 128
        %668 = vxpose.xlu0.b32.end [16/16] %v650, 128
        %v669 = vpop.trf.xlu0
        %v670 = vpop.trf.xlu0
        %v671 = vpop.trf.xlu0
        %v672 = vpop.trf.xlu0
        %v673 = vpop.trf.xlu0
        %v674 = vpop.trf.xlu0
        %v675 = vpop.trf.xlu0
        %v676 = vpop.trf.xlu0
        %v677 = vpop.trf.xlu0
        %v678 = vpop.trf.xlu0
        %v679 = vpop.trf.xlu0
        %v680 = vpop.trf.xlu0
        %v681 = vpop.trf.xlu0
        %v682 = vpop.trf.xlu0
        %v683 = vpop.trf.xlu0
        %v684 = vpop.trf.xlu0
        %685 = vst [vmem:[%s242] sm:$0xff] %v669
        %s686 = sand.u32 %s140, 1
        %s687 = scalar_lea.sflag [#allocation4], %s686
        %s688 = sand.u32 %s140, 1
        %s689 = smul.addr %s688, 8
        %s690 = scalar_lea.vmem [#allocation5], %s689
        // Predicated region
        $region45: #{tpu_custom_call.1} parent=39 // pred_check
          %p691 = pneg %p150
        $region46: #{tpu_custom_call.1} parent=39 // pred_check_branch
          %693 = sbr.rel (%p691) target = $region48
        $region47: #{tpu_custom_call.1} parent=39 // pred_region
          %s695 = ssub.s32 128, 128
          %696 = vsyncadd %s687, %s695
          %s697 = smul.addr %s22, 128
          %s698 = scalar_lea.hbm %s5, %s697
          %s700 = sshll.u32 %s690, 4
          %s701 = int_to_ptr.vmem [resolvable:$true] %s700
          %703 = dma.vmem_to_hbm [thread:$0]  %s701, 128, %s698, %s687
        $region48: #{tpu_custom_call.1} parent=39 // pred_fallthru
          _
      $region40: #{tpu_custom_call.1} parent=5 // pred_fallthru
        _
      %p704 = scmp.le.s32.totalorder 2, %s17
      // Predicated region
      $region49: #{tpu_custom_call.1} parent=5 // pred_check
        %p705 = pneg %p704
      $region50: #{tpu_custom_call.1} parent=5 // pred_check_branch
        %707 = sbr.rel (%p705) target = $region52
      $region51: #{tpu_custom_call.1} parent=5 // pred_region
        %s708 = ssub.s32 %s17, 2
        // Predicated region
        $region53: #{tpu_custom_call.1} parent=51 // pred_check
          %p709 = pneg %p156
        $region54: #{tpu_custom_call.1} parent=51 // pred_check_branch
          %711 = sbr.rel (%p709) target = $region56
        $region55: #{tpu_custom_call.1} parent=51 // pred_region
          %s712 = sand.u32 %s141, 1
          %s713 = scalar_lea.sflag [#allocation4], %s712
          %s714 = sand.u32 %s141, 1
          %s715 = smul.addr %s714, 8
          %s716 = scalar_lea.vmem [#allocation5], %s715
          %717 = dma.done %s713, 128
        $region56: #{tpu_custom_call.1} parent=51 // pred_fallthru
          _
      $region52: #{tpu_custom_call.1} parent=5 // pred_fallthru
        _
    $region6: #{tpu_custom_call.1} parent=1 // loop_footer
      %s21 = sadd.s32 1, %s17
    $region7: #{tpu_custom_call.1} parent=1 // loop_footer_branch
      %16 = sbr.rel target = $region3
    $region8: #{tpu_custom_call.1} parent=1 // loop_exit
      _
    %718 = vsyncpa [#allocation3], 1
    %s719 = scalar_lea.sflag [#allocation3], 1
    %720 = vsyncpa %s719, 1
    %721 = vsyncpa [#allocation4], 1
    %s722 = scalar_lea.sflag [#allocation4], 1
    %723 = vsyncpa %s722, 1

// kernel: tpu_custom_call.1
$region0: #{tpu_custom_call.1}
  #allocation0 [shape = 'u32[]', space=smem, size = 0x4, offset = 0x4, fixed_abs, tag = 'smem constant byte address 0x4 - core index']
  #allocation1 [shape = 'u32[144,128]{1,0:T(1,128)}', space=vmem, size = 0x12000, scoped, tag = 'internal scratch']
  %s0 = inlined_call_operand.hbm [shape: f32[256,128], index: 0, kind: input, shape index: {}]
  %s1 = inlined_call_operand.vmem [shape: f32[128,64], index: 1, kind: input, shape index: {}]
  %s2 = inlined_call_operand.vmem [shape: f32[1,64], index: 2, kind: input, shape index: {}]
  %s3 = inlined_call_operand.vmem [shape: f32[64,128], index: 3, kind: input, shape index: {}]
  %s4 = inlined_call_operand.vmem [shape: f32[1,128], index: 4, kind: input, shape index: {}]
  %s5 = inlined_call_operand.hbm [shape: f32[8,256], index: 5, kind: output, shape index: {}]
  %s6 = sld [smem:[#allocation0]]
  $region57: #{tpu_custom_call.1} parent=0
    _
  %s8 = ssub.s32 1, %s6
  %s9 = scalar_select 0, %s8, %s6
  $region1: #{tpu_custom_call.1} parent=0
    #allocation2 [shape = 'u8[131072]{0}', space=vmem, size = 0x20000, scoped, tag = 'input window, operand 0']
    #allocation3 [shape = 's32[2]{0}', space=sflag, size = 0x8, scoped, tag = 'scoped memory for tpu_custom_call.1']
    #allocation4 [shape = 's32[2]{0}', space=sflag, size = 0x8, scoped, tag = 'scoped memory for tpu_custom_call.1']
    #allocation5 [shape = 'u8[8192]{0}', space=vmem, size = 0x2000, scoped, tag = 'output window, operand 0']
    %10 = vsyncpa [#allocation3], 0
    %s11 = scalar_lea.sflag [#allocation3], 1
    %12 = vsyncpa %s11, 0
    %13 = vsyncpa [#allocation4], 0
    %s14 = scalar_lea.sflag [#allocation4], 1
    %15 = vsyncpa %s14, 0
    loop: start=0, step=1, limit=4
    $region2: #{tpu_custom_call.1} parent=1 // loop_pre_header
      _
    $region3: #{tpu_custom_call.1} parent=1 // loop_header
      %s17 = sphi 0, %s21
      %p18 = scmp.ge.s32.totalorder %s17, 4
      %s27 = sphi 0, %s29
      %s30 = sphi 0, %s27
      %s31 = sphi 0, %s30
      %s47 = sphi 0, %s31
      %s51 = sphi 0, %s51
      %s53 = sphi 0, %s51
      %s54 = sphi 0, %s53
      %s68 = sphi 0, %s54
      %s72 = sphi 0, %s72
      %s74 = sphi 0, %s72
      %s75 = sphi 0, %s74
      %s89 = sphi 0, %s75
      %s93 = sphi 0, %s93
      %s95 = sphi 0, %s93
      %s96 = sphi 0, %s95
      %s110 = sphi 0, %s96
      %s114 = sphi 0, %s114
      %s116 = sphi 0, %s114
      %s117 = sphi 0, %s116
      %s131 = sphi 0, %s117
      %s137 = sphi 0, %s139
      %s140 = sphi 0, %s137
      %s141 = sphi 0, %s140
      %s157 = sphi 0, %s141
    $region4: #{tpu_custom_call.1} parent=1 // loop_header_branch
      %20 = sbr.rel (%p18) target = $region8
    $region5: #{tpu_custom_call.1} parent=1 // loop_body
      %s22 = ssub.s32 %s17, 1
      %s23 = ssub.s32 %s17, 2
      %s24 = sadd.s32 %s17, 1
      %s25 = ssub.s32 %s17, %s24
      %p26 = scmp.eq.s32.totalorder %s25, 0
      %s28 = sadd.s32 %s27, 1
      %s29 = scalar_select %p26, %s27, %s28
      %p32 = pneg %p26
      %p33 = scmp.eq.s32.totalorder %s17, 1
      %p34 = por %p32, %p33
      %p35 = scmp.ne.s32.totalorder %s27, %s30
      %p36 = scmp.eq.s32.totalorder %s17, 0
      %p37 = por %p35, %p36
      %p38 = scmp.ne.s32.totalorder %s27, %s30
      %p39 = scmp.eq.s32.totalorder %s22, 1
      %p40 = por %p38, %p39
      %p41 = scmp.ne.s32.totalorder %s30, %s31
      %p42 = scmp.eq.s32.totalorder %s22, 0
      %p43 = por %p41, %p42
      %p44 = scmp.ne.s32.totalorder %s30, %s31
      %p45 = scmp.eq.s32.totalorder %s23, 1
      %p46 = por %p44, %p45
      %p48 = scmp.ne.s32.totalorder %s31, %s47
      %p49 = scmp.eq.s32.totalorder %s23, 0
      %p50 = por %p48, %p49
      %s52 = sadd.s32 %s51, 1
      %p55 = scmp.eq.s32.totalorder %s17, 1
      %p56 = scmp.ne.s32.totalorder %s51, %s53
      %p57 = scmp.eq.s32.totalorder %s17, 0
      %p58 = por %p56, %p57
      %p59 = scmp.ne.s32.totalorder %s51, %s53
      %p60 = scmp.eq.s32.totalorder %s22, 1
      %p61 = por %p59, %p60
      %p62 = scmp.ne.s32.totalorder %s53, %s54
      %p63 = scmp.eq.s32.totalorder %s22, 0
      %p64 = por %p62, %p63
      %p65 = scmp.ne.s32.totalorder %s53, %s54
      %p66 = scmp.eq.s32.totalorder %s23, 1
      %p67 = por %p65, %p66
      %p69 = scmp.ne.s32.totalorder %s54, %s68
      %p70 = scmp.eq.s32.totalorder %s23, 0
      %p71 = por %p69, %p70
      %s73 = sadd.s32 %s72, 1
      %p76 = scmp.eq.s32.totalorder %s17, 1
      %p77 = scmp.ne.s32.totalorder %s72, %s74
      %p78 = scmp.eq.s32.totalorder %s17, 0
      %p79 = por %p77, %p78
      %p80 = scmp.ne.s32.totalorder %s72, %s74
      %p81 = scmp.eq.s32.totalorder %s22, 1
      %p82 = por %p80, %p81
      %p83 = scmp.ne.s32.totalorder %s74, %s75
      %p84 = scmp.eq.s32.totalorder %s22, 0
      %p85 = por %p83, %p84
      %p86 = scmp.ne.s32.totalorder %s74, %s75
      %p87 = scmp.eq.s32.totalorder %s23, 1
      %p88 = por %p86, %p87
      %p90 = scmp.ne.s32.totalorder %s75, %s89
      %p91 = scmp.eq.s32.totalorder %s23, 0
      %p92 = por %p90, %p91
      %s94 = sadd.s32 %s93, 1
      %p97 = scmp.eq.s32.totalorder %s17, 1
      %p98 = scmp.ne.s32.totalorder %s93, %s95
      %p99 = scmp.eq.s32.totalorder %s17, 0
      %p100 = por %p98, %p99
      %p101 = scmp.ne.s32.totalorder %s93, %s95
      %p102 = scmp.eq.s32.totalorder %s22, 1
      %p103 = por %p101, %p102
      %p104 = scmp.ne.s32.totalorder %s95, %s96
      %p105 = scmp.eq.s32.totalorder %s22, 0
      %p106 = por %p104, %p105
      %p107 = scmp.ne.s32.totalorder %s95, %s96
      %p108 = scmp.eq.s32.totalorder %s23, 1
      %p109 = por %p107, %p108
      %p111 = scmp.ne.s32.totalorder %s96, %s110
      %p112 = scmp.eq.s32.totalorder %s23, 0
      %p113 = por %p111, %p112
      %s115 = sadd.s32 %s114, 1
      %p118 = scmp.eq.s32.totalorder %s17, 1
      %p119 = scmp.ne.s32.totalorder %s114, %s116
      %p120 = scmp.eq.s32.totalorder %s17, 0
      %p121 = por %p119, %p120
      %p122 = scmp.ne.s32.totalorder %s114, %s116
      %p123 = scmp.eq.s32.totalorder %s22, 1
      %p124 = por %p122, %p123
      %p125 = scmp.ne.s32.totalorder %s116, %s117
      %p126 = scmp.eq.s32.totalorder %s22, 0
      %p127 = por %p125, %p126
      %p128 = scmp.ne.s32.totalorder %s116, %s117
      %p129 = scmp.eq.s32.totalorder %s23, 1
      %p130 = por %p128, %p129
      %p132 = scmp.ne.s32.totalorder %s117, %s131
      %p133 = scmp.eq.s32.totalorder %s23, 0
      %p134 = por %p132, %p133
      %s135 = ssub.s32 %s17, %s24
      %p136 = scmp.eq.s32.totalorder %s135, 0
      %s138 = sadd.s32 %s137, 1
      %s139 = scalar_select %p136, %s137, %s138
      %p142 = pneg %p136
      %p143 = scmp.eq.s32.totalorder %s17, 1
      %p144 = por %p142, %p143
      %p145 = scmp.ne.s32.totalorder %s137, %s140
      %p146 = scmp.eq.s32.totalorder %s17, 0
      %p147 = por %p145, %p146
      %p148 = scmp.ne.s32.totalorder %s137, %s140
      %p149 = scmp.eq.s32.totalorder %s22, 1
      %p150 = por %p148, %p149
      %p151 = scmp.ne.s32.totalorder %s140, %s141
      %p152 = scmp.eq.s32.totalorder %s22, 0
      %p153 = por %p151, %p152
      %p154 = scmp.ne.s32.totalorder %s140, %s141
      %p155 = scmp.eq.s32.totalorder %s23, 1
      %p156 = por %p154, %p155
      %p158 = scmp.ne.s32.totalorder %s141, %s157
      %p159 = scmp.eq.s32.totalorder %s23, 0
      %p160 = por %p158, %p159
      %p161 = scmp.le.s32.totalorder 1, %s17
      %p162 = scmp.lt.s32.totalorder %s17, 3
      %p163 = pnand %p161, %p162
      %p164 = pneg %p163
      // Predicated region
      $region9: #{tpu_custom_call.1} parent=5 // pred_check
        _
      $region10: #{tpu_custom_call.1} parent=5 // pred_check_branch
        %166 = sbr.rel (%p163) target = $region12
      $region11: #{tpu_custom_call.1} parent=5 // pred_region
        %s167 = ssub.s32 %s17, 1
        // Predicated region
        $region13: #{tpu_custom_call.1} parent=11 // pred_check
          %p168 = pneg %p64
        $region14: #{tpu_custom_call.1} parent=11 // pred_check_branch
          %170 = sbr.rel (%p168) target = $region16
        $region15: #{tpu_custom_call.1} parent=11 // pred_region
          _
        $region16: #{tpu_custom_call.1} parent=11 // pred_fallthru
          _
        // Predicated region
        $region17: #{tpu_custom_call.1} parent=11 // pred_check
          %p171 = pneg %p85
        $region18: #{tpu_custom_call.1} parent=11 // pred_check_branch
          %173 = sbr.rel (%p171) target = $region20
        $region19: #{tpu_custom_call.1} parent=11 // pred_region
          _
        $region20: #{tpu_custom_call.1} parent=11 // pred_fallthru
          _
        // Predicated region
        $region21: #{tpu_custom_call.1} parent=11 // pred_check
          %p174 = pneg %p106
        $region22: #{tpu_custom_call.1} parent=11 // pred_check_branch
          %176 = sbr.rel (%p174) target = $region24
        $region23: #{tpu_custom_call.1} parent=11 // pred_region
          _
        $region24: #{tpu_custom_call.1} parent=11 // pred_fallthru
          _
        // Predicated region
        $region25: #{tpu_custom_call.1} parent=11 // pred_check
          %p177 = pneg %p127
        $region26: #{tpu_custom_call.1} parent=11 // pred_check_branch
          %179 = sbr.rel (%p177) target = $region28
        $region27: #{tpu_custom_call.1} parent=11 // pred_region
          _
        $region28: #{tpu_custom_call.1} parent=11 // pred_fallthru
          _
      $region12: #{tpu_custom_call.1} parent=5 // pred_fallthru
        _
      %p180 = scmp.lt.s32.totalorder %s17, 2
      // Predicated region
      $region29: #{tpu_custom_call.1} parent=5 // pred_check
        %p181 = pneg %p180
      $region30: #{tpu_custom_call.1} parent=5 // pred_check_branch
        %183 = sbr.rel (%p181) target = $region32
      $region31: #{tpu_custom_call.1} parent=5 // pred_region
        // Predicated region
        $region33: #{tpu_custom_call.1} parent=31 // pred_check
          %p184 = pneg %p37
        $region34: #{tpu_custom_call.1} parent=31 // pred_check_branch
          %186 = sbr.rel (%p184) target = $region36
        $region35: #{tpu_custom_call.1} parent=31 // pred_region
          %s187 = sand.u32 %s27, 1
          %s188 = scalar_lea.sflag [#allocation3], %s187
          %s189 = sand.u32 %s27, 1
          %s190 = smul.addr %s189, 128
          %s191 = scalar_lea.vmem [#allocation2], %s190
          %s192 = smul.u32 16, %s17
          %s194 = ssub.s32 2048, 2048
          %195 = vsyncadd %s188, %s194
          %s196 = smul.addr %s192, 128
          %s197 = scalar_lea.hbm %s0, %s196
          %s198 = sshll.u32 %s191, 4
          %s199 = int_to_ptr.vmem [resolvable:$true] %s198
          %204 = dma.hbm_to_vmem [thread:$0]  %s197, 2048, %s199, %s188, 128, 128, 8
        $region36: #{tpu_custom_call.1} parent=31 // pred_fallthru
          _
      $region32: #{tpu_custom_call.1} parent=5 // pred_fallthru
        _
      %p205 = scmp.le.s32.totalorder 1, %s17
      %p206 = scmp.lt.s32.totalorder %s17, 3
      %p207 = pnand %p205, %p206
      %p208 = pneg %p207
      // Predicated region
      $region37: #{tpu_custom_call.1} parent=5 // pred_check
        _
      $region38: #{tpu_custom_call.1} parent=5 // pred_check_branch
        %210 = sbr.rel (%p207) target = $region40
      $region39: #{tpu_custom_call.1} parent=5 // pred_region
        %s211 = ssub.s32 %s17, 1
        %s212 = sand.u32 %s30, 1
        %s213 = scalar_lea.sflag [#allocation3], %s212
        %s214 = sand.u32 %s30, 1
        %s215 = smul.addr %s214, 128
        %s216 = scalar_lea.vmem [#allocation2], %s215
        // Predicated region
        $region41: #{tpu_custom_call.1} parent=39 // pred_check
          %p217 = pneg %p43
        $region42: #{tpu_custom_call.1} parent=39 // pred_check_branch
          %219 = sbr.rel (%p217) target = $region44
        $region43: #{tpu_custom_call.1} parent=39 // pred_region
          %220 = dma.done %s213, 2048
        $region44: #{tpu_custom_call.1} parent=39 // pred_fallthru
          _
        %s221 = sand.u32 %s30, 1
        %s222 = scalar_lea.sflag [#allocation3], %s221
        %s223 = sand.u32 %s30, 1
        %s224 = smul.addr %s223, 128
        %s225 = scalar_lea.vmem [#allocation2], %s224
        %p226 = pneg %p43
        %p227 = pneg %p40
        %p228 = pneg %p64
        %p229 = pneg %p61
        %p230 = pneg %p85
        %p231 = pneg %p82
        %p232 = pneg %p106
        %p233 = pneg %p103
        %p234 = pneg %p127
        %p235 = pneg %p124
        %p236 = pneg %p153
        %p237 = pneg %p150
        %s238 = sand.u32 %s140, 1
        %s239 = scalar_lea.sflag [#allocation4], %s238
        %s240 = sand.u32 %s140, 1
        %s241 = smul.addr %s240, 8
        %s242 = scalar_lea.vmem [#allocation5], %s241
        %s243 = smul.u32 16, %s22
        %v244 = vld [vmem:[%s216] sm:$0xff]
        %v245 = vld [vmem:[%s216 + $0x8] sm:$0xff]
        %v246 = vld [vmem:[%s216 + $0x10] sm:$0xff]
        %v247 = vld [vmem:[%s216 + $0x18] sm:$0xff]
        %v248 = vld [vmem:[%s216 + $0x20] sm:$0xff]
        %v249 = vld [vmem:[%s216 + $0x28] sm:$0xff]
        %v250 = vld [vmem:[%s216 + $0x30] sm:$0xff]
        %v251 = vld [vmem:[%s216 + $0x38] sm:$0xff]
        %v252 = vld [vmem:[%s216 + $0x40] sm:$0xff]
        %v253 = vld [vmem:[%s216 + $0x48] sm:$0xff]
        %v254 = vld [vmem:[%s216 + $0x50] sm:$0xff]
        %v255 = vld [vmem:[%s216 + $0x58] sm:$0xff]
        %v256 = vld [vmem:[%s216 + $0x60] sm:$0xff]
        %v257 = vld [vmem:[%s216 + $0x68] sm:$0xff]
        %v258 = vld [vmem:[%s216 + $0x70] sm:$0xff]
        %v259 = vld [vmem:[%s216 + $0x78] sm:$0xff]
        %v260 = vld [vmem:[%s1] sm:$0xff]
        %v261 = vld [vmem:[%s1 + $0x8] sm:$0xff]
        %v262 = vld [vmem:[%s1 + $0x10] sm:$0xff]
        %v263 = vld [vmem:[%s1 + $0x18] sm:$0xff]
        %v264 = vld [vmem:[%s1 + $0x20] sm:$0xff]
        %v265 = vld [vmem:[%s1 + $0x28] sm:$0xff]
        %v266 = vld [vmem:[%s1 + $0x30] sm:$0xff]
        %v267 = vld [vmem:[%s1 + $0x38] sm:$0xff]
        %v268 = vld [vmem:[%s1 + $0x40] sm:$0xff]
        %v269 = vld [vmem:[%s1 + $0x48] sm:$0xff]
        %v270 = vld [vmem:[%s1 + $0x50] sm:$0xff]
        %v271 = vld [vmem:[%s1 + $0x58] sm:$0xff]
        %v272 = vld [vmem:[%s1 + $0x60] sm:$0xff]
        %v273 = vld [vmem:[%s1 + $0x68] sm:$0xff]
        %v274 = vld [vmem:[%s1 + $0x70] sm:$0xff]
        %v275 = vld [vmem:[%s1 + $0x78] sm:$0xff]
        %v276 = vld [vmem:[%s2] sm:$0x1]
        %v278 = vlaneseq
        %v279 = vshrl.u32 %v278, 7
        %v280 = vsub.s32 0, %v279
        %v281 = vrot.slane %v276, %v280
        %283 = vmatprep.subr.mxu0 0.0
        %284 = vmatpush1.msra.mxu0 %v260
        %285 = vmatprep.subr.mxu0 0.0
        %286 = vmatpush1.msra.mxu0 %v261
        %287 = vmatprep.subr.mxu0 0.0
        %288 = vmatpush1.msra.mxu0 %v262
        %289 = vmatprep.subr.mxu0 0.0
        %290 = vmatpush1.msra.mxu0 %v263
        %291 = vmatprep.subr.mxu0 0.0
        %292 = vmatpush1.msra.mxu0 %v264
        %293 = vmatprep.subr.mxu0 0.0
        %294 = vmatpush1.msra.mxu0 %v265
        %295 = vmatprep.subr.mxu0 0.0
        %296 = vmatpush1.msra.mxu0 %v266
        %297 = vmatprep.subr.mxu0 0.0
        %298 = vmatpush1.msra.mxu0 %v267
        %299 = vmatprep.subr.mxu0 0.0
        %300 = vmatpush1.msra.mxu0 %v268
        %301 = vmatprep.subr.mxu0 0.0
        %302 = vmatpush1.msra.mxu0 %v269
        %303 = vmatprep.subr.mxu0 0.0
        %304 = vmatpush1.msra.mxu0 %v270
        %305 = vmatprep.subr.mxu0 0.0
        %306 = vmatpush1.msra.mxu0 %v271
        %307 = vmatprep.subr.mxu0 0.0
        %308 = vmatpush1.msra.mxu0 %v272
        %309 = vmatprep.subr.mxu0 0.0
        %310 = vmatpush1.msra.mxu0 %v273
        %311 = vmatprep.subr.mxu0 0.0
        %312 = vmatpush1.msra.mxu0 %v274
        %313 = vmatprep.subr.mxu0 0.0
        %314 = vmatpush1.msra.mxu0 %v275
        %315 = vmatprep.subr.mxu0 0.0
        %316 = vmatpush1.msra.mxu0 0.0
        %317 = vmatprep.subr.mxu0 0.0
        %318 = vmatpush1.msra.mxu0 0.0
        %319 = vmatprep.subr.mxu0 0.0
        %320 = vmatpush1.msra.mxu0 0.0
        %321 = vmatprep.subr.mxu0 0.0
        %322 = vmatpush1.msra.mxu0 0.0
        %323 = vmatprep.subr.mxu0 0.0
        %324 = vmatpush1.msra.mxu0 0.0
        %325 = vmatprep.subr.mxu0 0.0
        %326 = vmatpush1.msra.mxu0 0.0
        %327 = vmatprep.subr.mxu0 0.0
        %328 = vmatpush1.msra.mxu0 0.0
        %329 = vmatprep.subr.mxu0 0.0
        %330 = vmatpush1.msra.mxu0 0.0
        %331 = vmatprep.subr.mxu0 0.0
        %332 = vmatpush1.msra.mxu0 0.0
        %333 = vmatprep.subr.mxu0 0.0
        %334 = vmatpush1.msra.mxu0 0.0
        %335 = vmatprep.subr.mxu0 0.0
        %336 = vmatpush1.msra.mxu0 0.0
        %337 = vmatprep.subr.mxu0 0.0
        %338 = vmatpush1.msra.mxu0 0.0
        %339 = vmatprep.subr.mxu0 0.0
        %340 = vmatpush1.msra.mxu0 0.0
        %341 = vmatprep.subr.mxu0 0.0
        %342 = vmatpush1.msra.mxu0 0.0
        %343 = vmatprep.subr.mxu0 0.0
        %344 = vmatpush1.msra.mxu0 0.0
        %345 = vmatprep.subr.mxu0 0.0
        %346 = vmatpush1.msra.mxu0 0.0
        %347 = vmatprep.mubr.f32.mxu0 0.0
        %348 = vmatmul.mubr.f32.gmra.mrb[0].mxu0 %v244
        %v349 = vpop.f32.mrb[0].mxu0
        %v350 = vadd.f32 %v281, %v349
        %v351 = vpop.f32.mrb[0].mxu0
        %352 = vmatprep.mubr.f32.mxu0 0.0
        %353 = vmatmul.mubr.f32.gmra.mrb[0].mxu0 %v245
        %v354 = vpop.f32.mrb[0].mxu0
        %v355 = vadd.f32 %v281, %v354
        %v356 = vpop.f32.mrb[0].mxu0
        %357 = vmatprep.mubr.f32.mxu0 0.0
        %358 = vmatmul.mubr.f32.gmra.mrb[0].mxu0 %v246
        %v359 = vpop.f32.mrb[0].mxu0
        %v360 = vadd.f32 %v281, %v359
        %v361 = vpop.f32.mrb[0].mxu0
        %362 = vmatprep.mubr.f32.mxu0 0.0
        %363 = vmatmul.mubr.f32.gmra.mrb[0].mxu0 %v247
        %v364 = vpop.f32.mrb[0].mxu0
        %v365 = vadd.f32 %v281, %v364
        %v366 = vpop.f32.mrb[0].mxu0
        %367 = vmatprep.mubr.f32.mxu0 0.0
        %368 = vmatmul.mubr.f32.gmra.mrb[0].mxu0 %v248
        %v369 = vpop.f32.mrb[0].mxu0
        %v370 = vadd.f32 %v281, %v369
        %v371 = vpop.f32.mrb[0].mxu0
        %372 = vmatprep.mubr.f32.mxu0 0.0
        %373 = vmatmul.mubr.f32.gmra.mrb[0].mxu0 %v249
        %v374 = vpop.f32.mrb[0].mxu0
        %v375 = vadd.f32 %v281, %v374
        %v376 = vpop.f32.mrb[0].mxu0
        %377 = vmatprep.mubr.f32.mxu0 0.0
        %378 = vmatmul.mubr.f32.gmra.mrb[0].mxu0 %v250
        %v379 = vpop.f32.mrb[0].mxu0
        %v380 = vadd.f32 %v281, %v379
        %v381 = vpop.f32.mrb[0].mxu0
        %382 = vmatprep.mubr.f32.mxu0 0.0
        %383 = vmatmul.mubr.f32.gmra.mrb[0].mxu0 %v251
        %v384 = vpop.f32.mrb[0].mxu0
        %v385 = vadd.f32 %v281, %v384
        %v386 = vpop.f32.mrb[0].mxu0
        %387 = vmatprep.mubr.f32.mxu0 0.0
        %388 = vmatmul.mubr.f32.gmra.mrb[0].mxu0 %v252
        %v389 = vpop.f32.mrb[0].mxu0
        %v390 = vadd.f32 %v281, %v389
        %v391 = vpop.f32.mrb[0].mxu0
        %392 = vmatprep.mubr.f32.mxu0 0.0
        %393 = vmatmul.mubr.f32.gmra.mrb[0].mxu0 %v253
        %v394 = vpop.f32.mrb[0].mxu0
        %v395 = vadd.f32 %v281, %v394
        %v396 = vpop.f32.mrb[0].mxu0
        %397 = vmatprep.mubr.f32.mxu0 0.0
        %398 = vmatmul.mubr.f32.gmra.mrb[0].mxu0 %v254
        %v399 = vpop.f32.mrb[0].mxu0
        %v400 = vadd.f32 %v281, %v399
        %v401 = vpop.f32.mrb[0].mxu0
        %402 = vmatprep.mubr.f32.mxu0 0.0
        %403 = vmatmul.mubr.f32.gmra.mrb[0].mxu0 %v255
        %v404 = vpop.f32.mrb[0].mxu0
        %v405 = vadd.f32 %v281, %v404
        %v406 = vpop.f32.mrb[0].mxu0
        %407 = vmatprep.mubr.f32.mxu0 0.0
        %408 = vmatmul.mubr.f32.gmra.mrb[0].mxu0 %v256
        %v409 = vpop.f32.mrb[0].mxu0
        %v410 = vadd.f32 %v281, %v409
        %v411 = vpop.f32.mrb[0].mxu0
        %412 = vmatprep.mubr.f32.mxu0 0.0
        %413 = vmatmul.mubr.f32.gmra.mrb[0].mxu0 %v257
        %v414 = vpop.f32.mrb[0].mxu0
        %v415 = vadd.f32 %v281, %v414
        %v416 = vpop.f32.mrb[0].mxu0
        %417 = vmatprep.mubr.f32.mxu0 0.0
        %418 = vmatmul.mubr.f32.gmra.mrb[0].mxu0 %v258
        %v419 = vpop.f32.mrb[0].mxu0
        %v420 = vadd.f32 %v281, %v419
        %v421 = vpop.f32.mrb[0].mxu0
        %422 = vmatprep.mubr.f32.mxu0 0.0
        %423 = vmatmul.mubr.f32.gmra.mrb[0].mxu0 %v259
        %v424 = vpop.f32.mrb[0].mxu0
        %v425 = vadd.f32 %v281, %v424
        %v426 = vpop.f32.mrb[0].mxu0
        %427 = vdwg.mxu0
        %v428 = vmax.f32 %v350, 0.0
        %v429 = vmax.f32 %v355, 0.0
        %v430 = vmax.f32 %v360, 0.0
        %v431 = vmax.f32 %v365, 0.0
        %v432 = vmax.f32 %v370, 0.0
        %v433 = vmax.f32 %v375, 0.0
        %v434 = vmax.f32 %v380, 0.0
        %v435 = vmax.f32 %v385, 0.0
        %v436 = vmax.f32 %v390, 0.0
        %v437 = vmax.f32 %v395, 0.0
        %v438 = vmax.f32 %v400, 0.0
        %v439 = vmax.f32 %v405, 0.0
        %v440 = vmax.f32 %v410, 0.0
        %v441 = vmax.f32 %v415, 0.0
        %v442 = vmax.f32 %v420, 0.0
        %v443 = vmax.f32 %v425, 0.0
        %v444 = vld [vmem:[%s3] sm:$0xff]
        %v445 = vld [vmem:[%s3 + $0x8] sm:$0xff]
        %v446 = vld [vmem:[%s3 + $0x10] sm:$0xff]
        %v447 = vld [vmem:[%s3 + $0x18] sm:$0xff]
        %v448 = vld [vmem:[%s3 + $0x20] sm:$0xff]
        %v449 = vld [vmem:[%s3 + $0x28] sm:$0xff]
        %v450 = vld [vmem:[%s3 + $0x30] sm:$0xff]
        %v451 = vld [vmem:[%s3 + $0x38] sm:$0xff]
        %v452 = vld [vmem:[%s4] sm:$0x1]
        %v454 = vlaneseq
        %v455 = vshrl.u32 %v454, 7
        %v456 = vsub.s32 0, %v455
        %v457 = vrot.slane %v452, %v456
        %vm459 = vcmask 523264
        %v461 = vsel %vm459, %v428, 0
        %v464 = vsel %vm459, %v429, 0
        %v467 = vsel %vm459, %v430, 0
        %v470 = vsel %vm459, %v431, 0
        %v473 = vsel %vm459, %v432, 0
        %v476 = vsel %vm459, %v433, 0
        %v479 = vsel %vm459, %v434, 0
        %v482 = vsel %vm459, %v435, 0
        %v485 = vsel %vm459, %v436, 0
        %v488 = vsel %vm459, %v437, 0
        %v491 = vsel %vm459, %v438, 0
        %v494 = vsel %vm459, %v439, 0
        %v497 = vsel %vm459, %v440, 0
        %v500 = vsel %vm459, %v441, 0
        %v503 = vsel %vm459, %v442, 0
        %v506 = vsel %vm459, %v443, 0
        %508 = vmatprep.subr.mxu0 0.0
        %509 = vmatpush1.msra.mxu0 %v444
        %510 = vmatprep.subr.mxu0 0.0
        %511 = vmatpush1.msra.mxu0 %v445
        %512 = vmatprep.subr.mxu0 0.0
        %513 = vmatpush1.msra.mxu0 %v446
        %514 = vmatprep.subr.mxu0 0.0
        %515 = vmatpush1.msra.mxu0 %v447
        %516 = vmatprep.subr.mxu0 0.0
        %517 = vmatpush1.msra.mxu0 %v448
        %518 = vmatprep.subr.mxu0 0.0
        %519 = vmatpush1.msra.mxu0 %v449
        %520 = vmatprep.subr.mxu0 0.0
        %521 = vmatpush1.msra.mxu0 %v450
        %522 = vmatprep.subr.mxu0 0.0
        %523 = vmatpush1.msra.mxu0 %v451
        %524 = vmatprep.subr.mxu0 0.0
        %525 = vmatpush1.msra.mxu0 0.0
        %526 = vmatprep.subr.mxu0 0.0
        %527 = vmatpush1.msra.mxu0 0.0
        %528 = vmatprep.subr.mxu0 0.0
        %529 = vmatpush1.msra.mxu0 0.0
        %530 = vmatprep.subr.mxu0 0.0
        %531 = vmatpush1.msra.mxu0 0.0
        %532 = vmatprep.subr.mxu0 0.0
        %533 = vmatpush1.msra.mxu0 0.0
        %534 = vmatprep.subr.mxu0 0.0
        %535 = vmatpush1.msra.mxu0 0.0
        %536 = vmatprep.subr.mxu0 0.0
        %537 = vmatpush1.msra.mxu0 0.0
        %538 = vmatprep.subr.mxu0 0.0
        %539 = vmatpush1.msra.mxu0 0.0
        %540 = vmatprep.subr.mxu0 0.0
        %541 = vmatpush1.msra.mxu0 0.0
        %542 = vmatprep.subr.mxu0 0.0
        %543 = vmatpush1.msra.mxu0 0.0
        %544 = vmatprep.subr.mxu0 0.0
        %545 = vmatpush1.msra.mxu0 0.0
        %546 = vmatprep.subr.mxu0 0.0
        %547 = vmatpush1.msra.mxu0 0.0
        %548 = vmatprep.subr.mxu0 0.0
        %549 = vmatpush1.msra.mxu0 0.0
        %550 = vmatprep.subr.mxu0 0.0
        %551 = vmatpush1.msra.mxu0 0.0
        %552 = vmatprep.subr.mxu0 0.0
        %553 = vmatpush1.msra.mxu0 0.0
        %554 = vmatprep.subr.mxu0 0.0
        %555 = vmatpush1.msra.mxu0 0.0
        %556 = vmatprep.subr.mxu0 0.0
        %557 = vmatpush1.msra.mxu0 0.0
        %558 = vmatprep.subr.mxu0 0.0
        %559 = vmatpush1.msra.mxu0 0.0
        %560 = vmatprep.subr.mxu0 0.0
        %561 = vmatpush1.msra.mxu0 0.0
        %562 = vmatprep.subr.mxu0 0.0
        %563 = vmatpush1.msra.mxu0 0.0
        %564 = vmatprep.subr.mxu0 0.0
        %565 = vmatpush1.msra.mxu0 0.0
        %566 = vmatprep.subr.mxu0 0.0
        %567 = vmatpush1.msra.mxu0 0.0
        %568 = vmatprep.subr.mxu0 0.0
        %569 = vmatpush1.msra.mxu0 0.0
        %570 = vmatprep.subr.mxu0 0.0
        %571 = vmatpush1.msra.mxu0 0.0
        %572 = vmatprep.mubr.f32.mxu0 0.0
        %573 = vmatmul.mubr.f32.gmra.mrb[0].mxu0 %v461
        %v574 = vpop.f32.mrb[0].mxu0
        %v575 = vadd.f32 %v457, %v574
        %v576 = vpop.f32.mrb[0].mxu0
        %577 = vmatprep.mubr.f32.mxu0 0.0
        %578 = vmatmul.mubr.f32.gmra.mrb[0].mxu0 %v464
        %v579 = vpop.f32.mrb[0].mxu0
        %v580 = vadd.f32 %v457, %v579
        %v581 = vpop.f32.mrb[0].mxu0
        %582 = vmatprep.mubr.f32.mxu0 0.0
        %583 = vmatmul.mubr.f32.gmra.mrb[0].mxu0 %v467
        %v584 = vpop.f32.mrb[0].mxu0
        %v585 = vadd.f32 %v457, %v584
        %v586 = vpop.f32.mrb[0].mxu0
        %587 = vmatprep.mubr.f32.mxu0 0.0
        %588 = vmatmul.mubr.f32.gmra.mrb[0].mxu0 %v470
        %v589 = vpop.f32.mrb[0].mxu0
        %v590 = vadd.f32 %v457, %v589
        %v591 = vpop.f32.mrb[0].mxu0
        %592 = vmatprep.mubr.f32.mxu0 0.0
        %593 = vmatmul.mubr.f32.gmra.mrb[0].mxu0 %v473
        %v594 = vpop.f32.mrb[0].mxu0
        %v595 = vadd.f32 %v457, %v594
        %v596 = vpop.f32.mrb[0].mxu0
        %597 = vmatprep.mubr.f32.mxu0 0.0
        %598 = vmatmul.mubr.f32.gmra.mrb[0].mxu0 %v476
        %v599 = vpop.f32.mrb[0].mxu0
        %v600 = vadd.f32 %v457, %v599
        %v601 = vpop.f32.mrb[0].mxu0
        %602 = vmatprep.mubr.f32.mxu0 0.0
        %603 = vmatmul.mubr.f32.gmra.mrb[0].mxu0 %v479
        %v604 = vpop.f32.mrb[0].mxu0
        %v605 = vadd.f32 %v457, %v604
        %v606 = vpop.f32.mrb[0].mxu0
        %607 = vmatprep.mubr.f32.mxu0 0.0
        %608 = vmatmul.mubr.f32.gmra.mrb[0].mxu0 %v482
        %v609 = vpop.f32.mrb[0].mxu0
        %v610 = vadd.f32 %v457, %v609
        %v611 = vpop.f32.mrb[0].mxu0
        %612 = vmatprep.mubr.f32.mxu0 0.0
        %613 = vmatmul.mubr.f32.gmra.mrb[0].mxu0 %v485
        %v614 = vpop.f32.mrb[0].mxu0
        %v615 = vadd.f32 %v457, %v614
        %v616 = vpop.f32.mrb[0].mxu0
        %617 = vmatprep.mubr.f32.mxu0 0.0
        %618 = vmatmul.mubr.f32.gmra.mrb[0].mxu0 %v488
        %v619 = vpop.f32.mrb[0].mxu0
        %v620 = vadd.f32 %v457, %v619
        %v621 = vpop.f32.mrb[0].mxu0
        %622 = vmatprep.mubr.f32.mxu0 0.0
        %623 = vmatmul.mubr.f32.gmra.mrb[0].mxu0 %v491
        %v624 = vpop.f32.mrb[0].mxu0
        %v625 = vadd.f32 %v457, %v624
        %v626 = vpop.f32.mrb[0].mxu0
        %627 = vmatprep.mubr.f32.mxu0 0.0
        %628 = vmatmul.mubr.f32.gmra.mrb[0].mxu0 %v494
        %v629 = vpop.f32.mrb[0].mxu0
        %v630 = vadd.f32 %v457, %v629
        %v631 = vpop.f32.mrb[0].mxu0
        %632 = vmatprep.mubr.f32.mxu0 0.0
        %633 = vmatmul.mubr.f32.gmra.mrb[0].mxu0 %v497
        %v634 = vpop.f32.mrb[0].mxu0
        %v635 = vadd.f32 %v457, %v634
        %v636 = vpop.f32.mrb[0].mxu0
        %637 = vmatprep.mubr.f32.mxu0 0.0
        %638 = vmatmul.mubr.f32.gmra.mrb[0].mxu0 %v500
        %v639 = vpop.f32.mrb[0].mxu0
        %v640 = vadd.f32 %v457, %v639
        %v641 = vpop.f32.mrb[0].mxu0
        %642 = vmatprep.mubr.f32.mxu0 0.0
        %643 = vmatmul.mubr.f32.gmra.mrb[0].mxu0 %v503
        %v644 = vpop.f32.mrb[0].mxu0
        %v645 = vadd.f32 %v457, %v644
        %v646 = vpop.f32.mrb[0].mxu0
        %647 = vmatprep.mubr.f32.mxu0 0.0
        %648 = vmatmul.mubr.f32.gmra.mrb[0].mxu0 %v506
        %v649 = vpop.f32.mrb[0].mxu0
        %v650 = vadd.f32 %v457, %v649
        %v651 = vpop.f32.mrb[0].mxu0
        %652 = vdwg.mxu0
        %653 = vxpose.xlu0.b32.start [1/16] %v575, 128
        %654 = vxpose.xlu0.b32.cont [2/16] %v580, 128
        %655 = vxpose.xlu0.b32.cont [3/16] %v585, 128
        %656 = vxpose.xlu0.b32.cont [4/16] %v590, 128
        %657 = vxpose.xlu0.b32.cont [5/16] %v595, 128
        %658 = vxpose.xlu0.b32.cont [6/16] %v600, 128
        %659 = vxpose.xlu0.b32.cont [7/16] %v605, 128
        %660 = vxpose.xlu0.b32.cont [8/16] %v610, 128
        %661 = vxpose.xlu0.b32.cont [9/16] %v615, 128
        %662 = vxpose.xlu0.b32.cont [10/16] %v620, 128
        %663 = vxpose.xlu0.b32.cont [11/16] %v625, 128
        %664 = vxpose.xlu0.b32.cont [12/16] %v630, 128
        %665 = vxpose.xlu0.b32.cont [13/16] %v635, 128
        %666 = vxpose.xlu0.b32.cont [14/16] %v640, 128
        %667 = vxpose.xlu0.b32.cont [15/16] %v645, 128
        %668 = vxpose.xlu0.b32.end [16/16] %v650, 128
        %v669 = vpop.trf.xlu0
        %v670 = vpop.trf.xlu0
        %v671 = vpop.trf.xlu0
        %v672 = vpop.trf.xlu0
        %v673 = vpop.trf.xlu0
        %v674 = vpop.trf.xlu0
        %v675 = vpop.trf.xlu0
        %v676 = vpop.trf.xlu0
        %v677 = vpop.trf.xlu0
        %v678 = vpop.trf.xlu0
        %v679 = vpop.trf.xlu0
        %v680 = vpop.trf.xlu0
        %v681 = vpop.trf.xlu0
        %v682 = vpop.trf.xlu0
        %v683 = vpop.trf.xlu0
        %v684 = vpop.trf.xlu0
        %685 = vst [vmem:[%s242] sm:$0xff] %v669
        %s686 = sand.u32 %s140, 1
        %s687 = scalar_lea.sflag [#allocation4], %s686
        %s688 = sand.u32 %s140, 1
        %s689 = smul.addr %s688, 8
        %s690 = scalar_lea.vmem [#allocation5], %s689
        // Predicated region
        $region45: #{tpu_custom_call.1} parent=39 // pred_check
          %p691 = pneg %p150
        $region46: #{tpu_custom_call.1} parent=39 // pred_check_branch
          %693 = sbr.rel (%p691) target = $region48
        $region47: #{tpu_custom_call.1} parent=39 // pred_region
          %s695 = ssub.s32 128, 128
          %696 = vsyncadd %s687, %s695
          %s697 = smul.addr %s22, 128
          %s698 = scalar_lea.hbm %s5, %s697
          %s700 = sshll.u32 %s690, 4
          %s701 = int_to_ptr.vmem [resolvable:$true] %s700
          %703 = dma.vmem_to_hbm [thread:$0]  %s701, 128, %s698, %s687
        $region48: #{tpu_custom_call.1} parent=39 // pred_fallthru
          _
      $region40: #{tpu_custom_call.1} parent=5 // pred_fallthru
        _
      %p704 = scmp.le.s32.totalorder 2, %s17
      // Predicated region
      $region49: #{tpu_custom_call.1} parent=5 // pred_check
        %p705 = pneg %p704
      $region50: #{tpu_custom_call.1} parent=5 // pred_check_branch
        %707 = sbr.rel (%p705) target = $region52
      $region51: #{tpu_custom_call.1} parent=5 // pred_region
        %s708 = ssub.s32 %s17, 2
        // Predicated region
        $region53: #{tpu_custom_call.1} parent=51 // pred_check
          %p709 = pneg %p156
        $region54: #{tpu_custom_call.1} parent=51 // pred_check_branch
          %711 = sbr.rel (%p709) target = $region56
        $region55: #{tpu_custom_call.1} parent=51 // pred_region
          %s712 = sand.u32 %s141, 1
          %s713 = scalar_lea.sflag [#allocation4], %s712
          %s714 = sand.u32 %s141, 1
          %s715 = smul.addr %s714, 8
          %s716 = scalar_lea.vmem [#allocation5], %s715
          %717 = dma.done %s713, 128
        $region56: #{tpu_custom_call.1} parent=51 // pred_fallthru
          _
      $region52: #{tpu_custom_call.1} parent=5 // pred_fallthru
        _
    $region6: #{tpu_custom_call.1} parent=1 // loop_footer
      %s21 = sadd.s32 1, %s17
    $region7: #{tpu_custom_call.1} parent=1 // loop_footer_branch
      %16 = sbr.rel target = $region3
    $region8: #{tpu_custom_call.1} parent=1 // loop_exit
      _
    %718 = vsyncpa [#allocation3], 1
    %s719 = scalar_lea.sflag [#allocation3], 1
    %720 = vsyncpa %s719, 1
    %721 = vsyncpa [#allocation4], 1
    %s722 = scalar_lea.sflag [#allocation4], 1
    %723 = vsyncpa %s722, 1

</llo_original>
